<compile_context>
chip_gen: v7x
topology: tpu7x:2x2x1
jax: 0.10.0
libtpu: 0.0.40
codegen_flags: <defaults>
</compile_context>

<pallas_src>
import numpy as np
import jax
import jax.numpy as jnp
from jax.experimental import pallas as pl
from jax.experimental.pallas import tpu as pltpu

NUM_LEVELS = 2
STEPS_PER_LEVEL = 2


# ----------------------------------------------------------------------------- kernels
def _fused_flow_kernel(x_ref, m_ref, b_ref, o_ref):
    # y^T = M_out^T @ x^T + b_out   (pixels on the lane axis; lane-dense output block)
    o_ref[...] = (jnp.dot(m_ref[...], x_ref[...], preferred_element_type=jnp.float32)
                  + b_ref[...])


def fused_flow_level(X, mT_out, b_out):
    """X: (C, N) channels-by-pixels; returns (C_out, N) = M_out^T @ X + b_out."""
    C, N = X.shape
    Co = mT_out.shape[0]
    TN = 128 if N % 128 == 0 else N
    return pl.pallas_call(
        _fused_flow_kernel,
        out_shape=jax.ShapeDtypeStruct((Co, N), jnp.float32),
        grid_spec=pltpu.PrefetchScalarGridSpec(
            num_scalar_prefetch=0,
            grid=(N // TN,),
            in_specs=[pl.BlockSpec((C, TN), lambda i: (0, i)),
                      pl.BlockSpec((Co, C), lambda i: (0, 0)),
                      pl.BlockSpec((Co, 1), lambda i: (0, 0))],
            out_specs=pl.BlockSpec((Co, TN), lambda i: (0, i)),
        ),
        compiler_params=pltpu.CompilerParams(dimension_semantics=("parallel",)),
    )(X, mT_out, b_out)


def _causal_logprob_kernel(vnz_ref, at_ref, vfull_ref, mu_ref, ls_ref, out_ref):
    # mean_tile = v_nonzero @ A^T[:Dn, tile] + mu_tile   (bf16 weights, f32 accumulation)
    mean = jnp.dot(vnz_ref[...].astype(jnp.bfloat16), at_ref[...],
                   preferred_element_type=jnp.float32) + mu_ref[...]
    diff = vfull_ref[...] - mean
    logstd = ls_ref[...]
    ll = (-0.5 * jnp.log(2.0 * jnp.pi) - logstd
          - 0.5 * jnp.square(diff * jnp.exp(-logstd)))
    out_ref[0] = jnp.sum(ll, axis=1, keepdims=True)        # (B, 1) partial sum this tile


def causal_log_prob(v_nz, v_full, params):
    """ClusteredCausalDistribution.log_prob with all-zero env / intervention_targets.

    v_nz:   (B, Dn) the dims of v_latent actually written (rest are zero-padding).
    v_full: (B, D)  the full padded latent (needed for the residual term).
    """
    B, Dn = v_nz.shape
    _, D = v_full.shape
    at = params["AT_nz_bf16"]          # (Dn, D) bf16, precomputed at init
    mu = params["mu_row"]              # (1, D)
    ls = params["logstd_row"]          # (1, D)
    TN = 512 if D % 512 == 0 else D
    n_tiles = D // TN
    out = pl.pallas_call(
        _causal_logprob_kernel,
        out_shape=jax.ShapeDtypeStruct((n_tiles, B, 1), jnp.float32),
        grid_spec=pltpu.PrefetchScalarGridSpec(
            num_scalar_prefetch=0,
            grid=(n_tiles,),
            in_specs=[pl.BlockSpec((B, Dn), lambda j: (0, 0)),    # nonzero latents
                      pl.BlockSpec((Dn, TN), lambda j: (0, j)),   # A^T[:Dn, tile] (bf16)
                      pl.BlockSpec((B, TN), lambda j: (0, j)),    # full v, tile columns
                      pl.BlockSpec((1, TN), lambda j: (0, j)),    # mu tile
                      pl.BlockSpec((1, TN), lambda j: (0, j))],   # logstd tile
            out_specs=pl.BlockSpec((1, B, 1), lambda j: (j, 0, 0)),
        ),
        compiler_params=pltpu.CompilerParams(dimension_semantics=("parallel",)),
    )(v_nz, at, v_full, mu, ls)
    return jnp.sum(out[:, :, 0], axis=0)                    # reduce the column tiles


# -------------------------------------------------------------------------------- glue
def squeeze_inverse(z):
    # normflows Squeeze.inverse: (B, C, H, W) -> (B, 4C, H/2, W/2), log_det = 0
    B, C, H, W = z.shape
    z = z.reshape(B, C, H // 2, 2, W // 2, 2)
    z = jnp.transpose(z, (0, 1, 3, 5, 2, 4))
    return z.reshape(B, 4 * C, H // 2, W // 2)


def init_params(key):
    hi = jax.lax.Precision.HIGHEST
    # channels seen by the per-level steps (after that level's Squeeze.inverse)
    step_channels = {1: 16, 0: 32}
    D = 4 * 16 * 16
    Dn = 512   # dims of v_latent actually written by the single split (2-level model)
    keys = iter(jax.random.split(key, 3 + NUM_LEVELS * STEPS_PER_LEVEL * 3))
    levels = []
    for i in range(NUM_LEVELS):
        C = step_channels[i]
        steps = []
        for _ in range(STEPS_PER_LEVEL):
            W = jnp.eye(C, dtype=jnp.float32) + 0.1 * jax.random.normal(next(keys), (C, C), jnp.float32)
            s = 0.05 * jax.random.normal(next(keys), (C,), jnp.float32)
            t = 0.1 * jax.random.normal(next(keys), (C,), jnp.float32)
            _, logabsdet = jnp.linalg.slogdet(W)
            steps.append(dict(w_inv=jnp.linalg.inv(W), logabsdet_w=logabsdet, s=s, t=t))
        # ---- fold the (reverse-order) affine inverses of this level into one (M, b) ----
        # z_out = z @ M + b  with  M = prod_{step in reversed} (W_inv^T diag(e^{-s}))
        M = jnp.eye(C, dtype=jnp.float32)
        b = jnp.zeros((C,), jnp.float32)
        logdet_sum = jnp.float32(0.0)
        for st in reversed(steps):
            Ms = st["w_inv"].T * jnp.exp(-st["s"])[None, :]         # W_inv^T @ diag(e^{-s})
            cs = -st["t"] * jnp.exp(-st["s"])
            M = jnp.matmul(M, Ms, precision=hi)
            b = jnp.matmul(b, Ms, precision=hi) + cs
            logdet_sum = logdet_sum + jnp.sum(st["s"]) + st["logabsdet_w"]
        half = C // 2
        levels.append(dict(
            steps=steps,                                            # kept for the reference
            fused_mT_out=jnp.transpose(M)[half:, :],                # only split-half rows needed
            fused_b_out=b[half:].reshape(half, 1),
            logdet_sum=logdet_sum,
        ))
    A = jnp.tril(0.02 * jax.random.normal(next(keys), (D, D), jnp.float32), k=-1)
    mu = 0.1 * jax.random.normal(next(keys), (D,), jnp.float32)
    logstd = 0.05 * jax.random.normal(next(keys), (D,), jnp.float32)
    # cluster_sizes only determines len() for the default zero intervention_targets
    return dict(levels=levels, A=A, mu=mu, logstd=logstd,
                AT_nz_bf16=jnp.transpose(A)[:Dn, :].astype(jnp.bfloat16),  # hoisted A^T slice
                mu_row=mu.reshape(1, D), logstd_row=logstd.reshape(1, D),
                cluster_sizes=(256, 256, 256, 256))


def causal_multiscale_flow_forward(x, params, y=None):
    """forward(x) = -log_prob(x)  (shape (B,), float32).

    Optimized path for this 2-level instantiation (output identical to forward_ref):
      * level 1: Squeeze.inverse, then both affine-step inverses folded into one
        pixels-on-lane matmul; only the post-split half channels are computed because
        the other half only feeds level 0, whose output is dropped by log_prob.
      * merges[0].inverse is a channel split (log_det = 0).
      * level 0: contributes only its data-independent log-det constant.
      * causal base log-prob: contraction over the 512 nonzero latent dims with bf16 A^T.
    """
    B, C, H, W = x.shape
    D = C * H * W
    z = x.astype(jnp.float32)
    log_q = jnp.zeros((B,), jnp.float32)

    # ----- level 1: Squeeze.inverse (log_det=0) + fused affine steps -----
    z = squeeze_inverse(z)                                   # (B, 16, 8, 8)
    Bc, Cc, Hc, Wc = z.shape
    lvl1 = params["levels"][1]
    X = jnp.transpose(z, (1, 0, 2, 3)).reshape(Cc, Bc * Hc * Wc)      # pixels on lane axis
    Yh = fused_flow_level(X, lvl1["fused_mT_out"], lvl1["fused_b_out"])  # (Cc/2, B*Hc*Wc)
    log_q = log_q - float(Hc * Wc) * lvl1["logdet_sum"]

    # merges[0].inverse: channel split (log_det = 0); nn.Flatten of the split half (NCHW)
    half = Cc // 2
    z_split_flat = jnp.transpose(Yh.reshape(half, Bc, Hc * Wc),
                                 (1, 0, 2)).reshape(Bc, half * Hc * Wc)

    # ----- level 0: z never reaches v_latent; only the constant log-det contributes -----
    log_q = log_q - float((Hc // 2) * (Wc // 2)) * params["levels"][0]["logdet_sum"]

    # ----- causal base distribution (default all-zero env / intervention_targets) -----
    Dn = z_split_flat.shape[1]
    v_full = jnp.concatenate([z_split_flat, jnp.zeros((B, D - Dn), jnp.float32)], axis=1)
    log_q = log_q + causal_log_prob(z_split_flat, v_full, params)
    return -log_q


def forward_ref(x, params):
    """Pure-JAX reference with the original (unfused, unelided) semantics."""
    hi = jax.lax.Precision.HIGHEST
    B, C, H, W = x.shape
    D = C * H * W
    z = x.astype(jnp.float32)
    log_q = jnp.zeros((B,), jnp.float32)
    z_split_flat = None
    for i in range(NUM_LEVELS - 1, -1, -1):
        z = squeeze_inverse(z)
        Bc, Cc, Hc, Wc = z.shape
        zp = jnp.transpose(z, (0, 2, 3, 1)).reshape(Bc * Hc * Wc, Cc)
        for step in reversed(params["levels"][i]["steps"]):
            zp = (jnp.dot(zp, step["w_inv"].T, precision=hi) - step["t"]) * jnp.exp(-step["s"])
            log_q = log_q - float(Hc * Wc) * (jnp.sum(step["s"]) + step["logabsdet_w"])
        z = jnp.transpose(zp.reshape(Bc, Hc, Wc, Cc), (0, 3, 1, 2))
        if i > 0:
            half = Cc // 2
            z, z_ = z[:, :half], z[:, half:]
            z_split_flat = z_.reshape(B, -1)
    n = z_split_flat.shape[1]
    v = jnp.concatenate([z_split_flat, jnp.zeros((B, D - n), jnp.float32)], axis=1)
    mean = jnp.dot(v, params["A"].T, precision=hi) + params["mu"]
    diff = v - mean
    ll = (-0.5 * jnp.log(2.0 * jnp.pi) - params["logstd"]
          - 0.5 * jnp.square(diff * jnp.exp(-params["logstd"])))
    return -(log_q + jnp.sum(ll, axis=1))


if __name__ == "__main__":
    key = jax.random.PRNGKey(0)
    kx, kp = jax.random.split(key)
    x = jax.random.normal(kx, (2, 4, 16, 16), jnp.float32)   # NCHW, like the PyTorch module
    params = init_params(kp)

    fwd = jax.jit(causal_multiscale_flow_forward)
    out = jax.block_until_ready(fwd(x, params))
    ref = jax.block_until_ready(forward_ref(x, params))

    assert out.shape == (2,) and out.dtype == jnp.float32
    np.testing.assert_allclose(np.asarray(out), np.asarray(ref), rtol=2e-2, atol=1e-2)
    print("KERNEL_OK")
</pallas_src>

<mosaic_0001>
module attributes {stable_mosaic.version = 11 : i64} {
  func.func @_fused_flow_kernel(%arg0: i32, %arg1: memref<16x128xf32, #tpu.memory_space<vmem>>, %arg2: memref<8x16xf32, #tpu.memory_space<vmem>>, %arg3: memref<8x1xf32, #tpu.memory_space<vmem>>, %arg4: memref<8x128xf32, #tpu.memory_space<vmem>>) attributes {dimension_semantics = [#tpu.dimension_semantics<parallel>], iteration_bounds = array<i64: 1>, scalar_prefetch = 0 : i64, scratch_operands = 0 : i64, tpu.core_type = #tpu.core_type<tc>, window_params = [{transform_indices = @transform_0, window_bounds = array<i64: 16, 128>}, {pipeline_mode = #tpu.pipeline_mode<synchronous>, transform_indices = @transform_1, window_bounds = array<i64: 8, 16>}, {pipeline_mode = #tpu.pipeline_mode<synchronous>, transform_indices = @transform_2, window_bounds = array<i64: 8, 1>}, {transform_indices = @transform_3, window_bounds = array<i64: 8, 128>}]} {
    %c0 = arith.constant 0 : index
    %c0_0 = arith.constant 0 : index
    %0 = vector.load %arg2[%c0, %c0_0] : memref<8x16xf32, #tpu.memory_space<vmem>>, vector<8x16xf32>
    %c0_1 = arith.constant 0 : index
    %c0_2 = arith.constant 0 : index
    %1 = vector.load %arg1[%c0_1, %c0_2] : memref<16x128xf32, #tpu.memory_space<vmem>>, vector<16x128xf32>
    %cst = arith.constant dense<0.000000e+00> : vector<8x128xf32>
    %2 = tpu.matmul %0, %1, %cst {dimension_numbers = #tpu.dot_dimension_numbers<[1], [0], [0], [1], [0, 0, 1, 1], [], []>} : vector<8x16xf32>, vector<16x128xf32>, vector<8x128xf32> -> vector<8x128xf32>
    %c0_3 = arith.constant 0 : index
    %c0_4 = arith.constant 0 : index
    %3 = vector.load %arg3[%c0_3, %c0_4] : memref<8x1xf32, #tpu.memory_space<vmem>>, vector<8x1xf32>
    %4 = vector.broadcast %3 : vector<8x1xf32> to vector<8x128xf32>
    %5 = arith.addf %2, %4 : vector<8x128xf32>
    %c0_5 = arith.constant 0 : index
    %c0_6 = arith.constant 0 : index
    %6 = vector.load %arg4[%c0_5, %c0_6] : memref<8x128xf32, #tpu.memory_space<vmem>>, vector<8x128xf32>
    tpu.vector_store %arg4[%c0_5, %c0_6], %5 {strides = array<i32>} : memref<8x128xf32, #tpu.memory_space<vmem>>, vector<8x128xf32>,
    return
  }
  func.func @transform_0(%arg0: i32) -> (i32, i32) {
    %c0_i32 = arith.constant 0 : i32
    %c0_i32_0 = arith.constant 0 : i32
    return %c0_i32, %arg0 : i32, i32
  }
  func.func @transform_1(%arg0: i32) -> (i32, i32) {
    %c0_i32 = arith.constant 0 : i32
    %c0_i32_0 = arith.constant 0 : i32
    %c0_i32_1 = arith.constant 0 : i32
    return %c0_i32, %c0_i32_0 : i32, i32
  }
  func.func @transform_2(%arg0: i32) -> (i32, i32) {
    %c0_i32 = arith.constant 0 : i32
    %c0_i32_0 = arith.constant 0 : i32
    %c0_i32_1 = arith.constant 0 : i32
    return %c0_i32, %c0_i32_0 : i32, i32
  }
  func.func @transform_3(%arg0: i32) -> (i32, i32) {
    %c0_i32 = arith.constant 0 : i32
    %c0_i32_0 = arith.constant 0 : i32
    return %c0_i32, %arg0 : i32, i32
  }
}

module attributes {stable_mosaic.version = 11 : i64} {
  func.func @_causal_logprob_kernel(%arg0: i32, %arg1: memref<2x512xf32, #tpu.memory_space<vmem>>, %arg2: memref<512x512xbf16, #tpu.memory_space<vmem>>, %arg3: memref<2x512xf32, #tpu.memory_space<vmem>>, %arg4: memref<1x512xf32, #tpu.memory_space<vmem>>, %arg5: memref<1x512xf32, #tpu.memory_space<vmem>>, %arg6: memref<1x2x1xf32, #tpu.memory_space<vmem>>) attributes {dimension_semantics = [#tpu.dimension_semantics<parallel>], iteration_bounds = array<i64: 2>, scalar_prefetch = 0 : i64, scratch_operands = 0 : i64, tpu.core_type = #tpu.core_type<tc>, window_params = [{pipeline_mode = #tpu.pipeline_mode<synchronous>, transform_indices = @transform_0, window_bounds = array<i64: 2, 512>}, {transform_indices = @transform_1, window_bounds = array<i64: 512, 512>}, {transform_indices = @transform_2, window_bounds = array<i64: 2, 512>}, {transform_indices = @transform_3, window_bounds = array<i64: 1, 512>}, {transform_indices = @transform_4, window_bounds = array<i64: 1, 512>}, {transform_indices = @transform_5, window_bounds = array<i64: 1, 2, 1>}]} {
    %c0 = arith.constant 0 : index
    %c0_0 = arith.constant 0 : index
    %0 = vector.load %arg1[%c0, %c0_0] : memref<2x512xf32, #tpu.memory_space<vmem>>, vector<2x512xf32>
    %1 = arith.truncf %0 : vector<2x512xf32> to vector<2x512xbf16>
    %c0_1 = arith.constant 0 : index
    %c0_2 = arith.constant 0 : index
    %2 = vector.load %arg2[%c0_1, %c0_2] : memref<512x512xbf16, #tpu.memory_space<vmem>>, vector<512x512xbf16>
    %cst = arith.constant dense<0.000000e+00> : vector<2x512xf32>
    %3 = tpu.matmul %1, %2, %cst {dimension_numbers = #tpu.dot_dimension_numbers<[1], [0], [0], [1], [0, 0, 1, 1], [], []>} : vector<2x512xbf16>, vector<512x512xbf16>, vector<2x512xf32> -> vector<2x512xf32>
    %c0_3 = arith.constant 0 : index
    %c0_4 = arith.constant 0 : index
    %4 = vector.load %arg4[%c0_3, %c0_4] : memref<1x512xf32, #tpu.memory_space<vmem>>, vector<1x512xf32>
    %5 = vector.broadcast %4 : vector<1x512xf32> to vector<2x512xf32>
    %6 = arith.addf %3, %5 : vector<2x512xf32>
    %c0_5 = arith.constant 0 : index
    %c0_6 = arith.constant 0 : index
    %7 = vector.load %arg3[%c0_5, %c0_6] : memref<2x512xf32, #tpu.memory_space<vmem>>, vector<2x512xf32>
    %8 = arith.subf %7, %6 : vector<2x512xf32>
    %c0_7 = arith.constant 0 : index
    %c0_8 = arith.constant 0 : index
    %9 = vector.load %arg5[%c0_7, %c0_8] : memref<1x512xf32, #tpu.memory_space<vmem>>, vector<1x512xf32>
    %cst_9 = arith.constant 6.28318548 : f32
    %10 = math.log %cst_9 : f32
    %cst_10 = arith.constant -5.000000e-01 : f32
    %11 = arith.mulf %cst_10, %10 : f32
    %12 = vector.broadcast %11 : f32 to vector<1x512xf32>
    %13 = arith.subf %12, %9 : vector<1x512xf32>
    %cst_11 = arith.constant 0.000000e+00 : f32
    %14 = vector.broadcast %cst_11 : f32 to vector<1x512xf32>
    %15 = arith.subf %14, %9 : vector<1x512xf32>
    %16 = math.exp %15 : vector<1x512xf32>
    %17 = vector.broadcast %16 : vector<1x512xf32> to vector<2x512xf32>
    %18 = arith.mulf %8, %17 : vector<2x512xf32>
    %19 = arith.mulf %18, %18 : vector<2x512xf32>
    %cst_12 = arith.constant 5.000000e-01 : f32
    %20 = vector.broadcast %cst_12 : f32 to vector<2x512xf32>
    %21 = arith.mulf %20, %19 : vector<2x512xf32>
    %22 = vector.broadcast %13 : vector<1x512xf32> to vector<2x512xf32>
    %23 = arith.subf %22, %21 : vector<2x512xf32>
    %cst_13 = arith.constant dense<0.000000e+00> : vector<2xf32>
    %24 = vector.multi_reduction <add>, %23, %cst_13 [1] : vector<2x512xf32> to vector<2xf32>
    %25 = vector.shape_cast %24 : vector<2xf32> to vector<2x1xf32>
    %c0_14 = arith.constant 0 : index
    %c0_15 = arith.constant 0 : index
    %c0_16 = arith.constant 0 : index
    %26 = vector.load %arg6[%c0_14, %c0_15, %c0_16] : memref<1x2x1xf32, #tpu.memory_space<vmem>>, vector<1x2x1xf32>
    %27 = vector.shape_cast %26 : vector<1x2x1xf32> to vector<2x1xf32>
    %28 = vector.shape_cast %25 : vector<2x1xf32> to vector<1x2x1xf32>
    tpu.vector_store %arg6[%c0_14, %c0_15, %c0_16], %28 {strides = array<i32>} : memref<1x2x1xf32, #tpu.memory_space<vmem>>, vector<1x2x1xf32>,
    return
  }
  func.func @transform_0(%arg0: i32) -> (i32, i32) {
    %c0_i32 = arith.constant 0 : i32
    %c0_i32_0 = arith.constant 0 : i32
    %c0_i32_1 = arith.constant 0 : i32
    return %c0_i32, %c0_i32_0 : i32, i32
  }
  func.func @transform_1(%arg0: i32) -> (i32, i32) {
    %c0_i32 = arith.constant 0 : i32
    %c0_i32_0 = arith.constant 0 : i32
    return %c0_i32, %arg0 : i32, i32
  }
  func.func @transform_2(%arg0: i32) -> (i32, i32) {
    %c0_i32 = arith.constant 0 : i32
    %c0_i32_0 = arith.constant 0 : i32
    return %c0_i32, %arg0 : i32, i32
  }
  func.func @transform_3(%arg0: i32) -> (i32, i32) {
    %c0_i32 = arith.constant 0 : i32
    %c0_i32_0 = arith.constant 0 : i32
    return %c0_i32, %arg0 : i32, i32
  }
  func.func @transform_4(%arg0: i32) -> (i32, i32) {
    %c0_i32 = arith.constant 0 : i32
    %c0_i32_0 = arith.constant 0 : i32
    return %c0_i32, %arg0 : i32, i32
  }
  func.func @transform_5(%arg0: i32) -> (i32, i32, i32) {
    %c0_i32 = arith.constant 0 : i32
    %c0_i32_0 = arith.constant 0 : i32
    %c0_i32_1 = arith.constant 0 : i32
    return %arg0, %c0_i32, %c0_i32_0 : i32, i32, i32
  }
}

</mosaic_0001>

<llo_original>
// kernel: causal_multiscale_flow_forward.2
$region0: #{causal_multiscale_flow_forward.2}
  #allocation0 [shape = 'u32[]', space=smem, size = 0x4, offset = 0x4, fixed_abs, tag = 'smem constant byte address 0x4 - core index']
  #allocation1 [shape = 'u32[144,128]{1,0:T(1,128)}', space=vmem, size = 0x12000, scoped, tag = 'internal scratch']
  %s0 = inlined_call_operand.vmem [shape: f32[16,128], index: 0, kind: input, shape index: {}]
  %s1 = inlined_call_operand.hbm [shape: f32[8,16], index: 1, kind: input, shape index: {}]
  %s2 = inlined_call_operand.vmem [shape: f32[8,1], index: 2, kind: input, shape index: {}]
  %s3 = inlined_call_operand.vmem [shape: f32[8,128], index: 3, kind: output, shape index: {}]
  %s4 = sld [smem:[#allocation0]]
  $region26: #{causal_multiscale_flow_forward.2} parent=0
    _
  %s6 = ssub.s32 1, %s4
  %s7 = scalar_select 0, %s6, %s4
  $region1: #{causal_multiscale_flow_forward.2} parent=0
    #allocation2 [shape = 'u8[4096]{0}', space=vmem, size = 0x1000, scoped, tag = 'input window, operand 1, single buffered']
    #allocation3 [shape = 's32[1]{0}', space=sflag, size = 0x4, scoped, tag = 'scoped memory for causal_multiscale_flow_forward.2']
    %8 = vsyncpa [#allocation3], 0
    // Predicated region
    $region2: #{causal_multiscale_flow_forward.2} parent=1 // pred_check
      _
    $region3: #{causal_multiscale_flow_forward.2} parent=1 // pred_check_branch
      %10 = sbr.rel (0) target = $region5
    $region4: #{causal_multiscale_flow_forward.2} parent=1 // pred_region
      _
    $region5: #{causal_multiscale_flow_forward.2} parent=1 // pred_fallthru
      _
    // Predicated region
    $region6: #{causal_multiscale_flow_forward.2} parent=1 // pred_check
      _
    $region7: #{causal_multiscale_flow_forward.2} parent=1 // pred_check_branch
      %12 = sbr.rel (0) target = $region9
    $region8: #{causal_multiscale_flow_forward.2} parent=1 // pred_region
      %s14 = ssub.s32 128, 128
      %15 = vsyncadd [#allocation3], %s14
      %s17 = sshll.u32 [#allocation2], 4
      %s18 = int_to_ptr.vmem [resolvable:$true] %s17
      %20 = dma.hbm_to_vmem [thread:$0]  %s1, 128, %s18, [#allocation3]
    $region9: #{causal_multiscale_flow_forward.2} parent=1 // pred_fallthru
      _
    // Predicated region
    $region10: #{causal_multiscale_flow_forward.2} parent=1 // pred_check
      _
    $region11: #{causal_multiscale_flow_forward.2} parent=1 // pred_check_branch
      %22 = sbr.rel (0) target = $region13
    $region12: #{causal_multiscale_flow_forward.2} parent=1 // pred_region
      _
    $region13: #{causal_multiscale_flow_forward.2} parent=1 // pred_fallthru
      _
    // Predicated region
    $region14: #{causal_multiscale_flow_forward.2} parent=1 // pred_check
      _
    $region15: #{causal_multiscale_flow_forward.2} parent=1 // pred_check_branch
      %24 = sbr.rel (0) target = $region17
    $region16: #{causal_multiscale_flow_forward.2} parent=1 // pred_region
      %25 = dma.done [#allocation3], 128
    $region17: #{causal_multiscale_flow_forward.2} parent=1 // pred_fallthru
      _
    %v26 = vld [vmem:[#allocation2] sm:$0xff]
    %v27 = vld [vmem:[%s0] sm:$0xff]
    %v28 = vld [vmem:[%s0 + $0x8] sm:$0xff]
    %v29 = vld [vmem:[%s2] sm:$0xff]
    %31 = vset.pattern.permute.xlu0 0
    %32 = vperm.xlu0 %31, %v29
    %v33 = vpop.permute.xlu0 %32
    %vm35 = vcmask 130048
    %v37 = vsel %vm35, %v26, 0
    %39 = vmatprep.subr.mxu0 0.0
    %40 = vmatpush1.msra.mxu0 %v27
    %41 = vmatprep.subr.mxu0 0.0
    %42 = vmatpush1.msra.mxu0 %v28
    %43 = vmatprep.subr.mxu0 0.0
    %44 = vmatpush1.msra.mxu0 0.0
    %45 = vmatprep.subr.mxu0 0.0
    %46 = vmatpush1.msra.mxu0 0.0
    %47 = vmatprep.subr.mxu0 0.0
    %48 = vmatpush1.msra.mxu0 0.0
    %49 = vmatprep.subr.mxu0 0.0
    %50 = vmatpush1.msra.mxu0 0.0
    %51 = vmatprep.subr.mxu0 0.0
    %52 = vmatpush1.msra.mxu0 0.0
    %53 = vmatprep.subr.mxu0 0.0
    %54 = vmatpush1.msra.mxu0 0.0
    %55 = vmatprep.subr.mxu0 0.0
    %56 = vmatpush1.msra.mxu0 0.0
    %57 = vmatprep.subr.mxu0 0.0
    %58 = vmatpush1.msra.mxu0 0.0
    %59 = vmatprep.subr.mxu0 0.0
    %60 = vmatpush1.msra.mxu0 0.0
    %61 = vmatprep.subr.mxu0 0.0
    %62 = vmatpush1.msra.mxu0 0.0
    %63 = vmatprep.subr.mxu0 0.0
    %64 = vmatpush1.msra.mxu0 0.0
    %65 = vmatprep.subr.mxu0 0.0
    %66 = vmatpush1.msra.mxu0 0.0
    %67 = vmatprep.subr.mxu0 0.0
    %68 = vmatpush1.msra.mxu0 0.0
    %69 = vmatprep.subr.mxu0 0.0
    %70 = vmatpush1.msra.mxu0 0.0
    %71 = vmatprep.subr.mxu0 0.0
    %72 = vmatpush1.msra.mxu0 0.0
    %73 = vmatprep.subr.mxu0 0.0
    %74 = vmatpush1.msra.mxu0 0.0
    %75 = vmatprep.subr.mxu0 0.0
    %76 = vmatpush1.msra.mxu0 0.0
    %77 = vmatprep.subr.mxu0 0.0
    %78 = vmatpush1.msra.mxu0 0.0
    %79 = vmatprep.subr.mxu0 0.0
    %80 = vmatpush1.msra.mxu0 0.0
    %81 = vmatprep.subr.mxu0 0.0
    %82 = vmatpush1.msra.mxu0 0.0
    %83 = vmatprep.subr.mxu0 0.0
    %84 = vmatpush1.msra.mxu0 0.0
    %85 = vmatprep.subr.mxu0 0.0
    %86 = vmatpush1.msra.mxu0 0.0
    %87 = vmatprep.subr.mxu0 0.0
    %88 = vmatpush1.msra.mxu0 0.0
    %89 = vmatprep.subr.mxu0 0.0
    %90 = vmatpush1.msra.mxu0 0.0
    %91 = vmatprep.subr.mxu0 0.0
    %92 = vmatpush1.msra.mxu0 0.0
    %93 = vmatprep.subr.mxu0 0.0
    %94 = vmatpush1.msra.mxu0 0.0
    %95 = vmatprep.subr.mxu0 0.0
    %96 = vmatpush1.msra.mxu0 0.0
    %97 = vmatprep.subr.mxu0 0.0
    %98 = vmatpush1.msra.mxu0 0.0
    %99 = vmatprep.subr.mxu0 0.0
    %100 = vmatpush1.msra.mxu0 0.0
    %101 = vmatprep.subr.mxu0 0.0
    %102 = vmatpush1.msra.mxu0 0.0
    %103 = vmatprep.mubr.f32.mxu0 0.0
    %104 = vmatmul.mubr.f32.gmra.mrb[0].mxu0 %v37
    %v105 = vpop.f32.mrb[0].mxu0
    %v106 = vadd.f32 %v33, %v105
    %v107 = vpop.f32.mrb[0].mxu0
    %108 = vdwg.mxu0
    %109 = vst [vmem:[%s3] sm:$0xff] %v106
    // Predicated region
    $region18: #{causal_multiscale_flow_forward.2} parent=1 // pred_check
      _
    $region19: #{causal_multiscale_flow_forward.2} parent=1 // pred_check_branch
      %111 = sbr.rel (0) target = $region21
    $region20: #{causal_multiscale_flow_forward.2} parent=1 // pred_region
      _
    $region21: #{causal_multiscale_flow_forward.2} parent=1 // pred_fallthru
      _
    // Predicated region
    $region22: #{causal_multiscale_flow_forward.2} parent=1 // pred_check
      _
    $region23: #{causal_multiscale_flow_forward.2} parent=1 // pred_check_branch
      %113 = sbr.rel (0) target = $region25
    $region24: #{causal_multiscale_flow_forward.2} parent=1 // pred_region
      _
    $region25: #{causal_multiscale_flow_forward.2} parent=1 // pred_fallthru
      _
    %114 = vsyncpa [#allocation3], 1

// kernel: causal_multiscale_flow_forward.3
$region0: #{causal_multiscale_flow_forward.3}
  #allocation0 [shape = 'u32[]', space=smem, size = 0x4, offset = 0x4, fixed_abs, tag = 'smem constant byte address 0x4 - core index']
  #allocation1 [shape = 'u32[144,128]{1,0:T(1,128)}', space=vmem, size = 0x12000, scoped, tag = 'internal scratch']
  %s0 = inlined_call_operand.vmem [shape: f32[2,512], index: 0, kind: input, shape index: {}]
  %s1 = inlined_call_operand.vmem [shape: bf16[512,1024], index: 1, kind: input, shape index: {}]
  %s2 = inlined_call_operand.vmem [shape: f32[2,1024], index: 2, kind: input, shape index: {}]
  %s3 = inlined_call_operand.vmem [shape: f32[1,1024], index: 3, kind: input, shape index: {}]
  %s4 = inlined_call_operand.vmem [shape: f32[1,1024], index: 4, kind: input, shape index: {}]
  %s5 = inlined_call_operand.vmem [shape: f32[2,2,1], index: 5, kind: output, shape index: {}]
  %s6 = sld [smem:[#allocation0]]
  $region76: #{causal_multiscale_flow_forward.3} parent=0
    _
  %s8 = ssub.s32 1, %s6
  %s9 = scalar_select 0, %s8, %s6
  $region1: #{causal_multiscale_flow_forward.3} parent=0
    #allocation2 [shape = 'u8[1048576]{0}', space=vmem, size = 0x100000, scoped, tag = 'input window, operand 1']
    loop: start=0, step=1, limit=4
    $region2: #{causal_multiscale_flow_forward.3} parent=1 // loop_pre_header
      _
    $region3: #{causal_multiscale_flow_forward.3} parent=1 // loop_header
      %s11 = sphi 0, %s15
      %p12 = scmp.ge.s32.totalorder %s11, 4
      %s19 = sphi 0, %s19
      %s21 = sphi 0, %s19
      %s22 = sphi 0, %s21
      %s36 = sphi 0, %s22
      %s42 = sphi 0, %s44
      %s45 = sphi 0, %s42
      %s46 = sphi 0, %s45
      %s62 = sphi 0, %s46
      %s68 = sphi 0, %s70
      %s71 = sphi 0, %s68
      %s72 = sphi 0, %s71
      %s88 = sphi 0, %s72
      %s94 = sphi 0, %s96
      %s97 = sphi 0, %s94
      %s98 = sphi 0, %s97
      %s114 = sphi 0, %s98
      %s120 = sphi 0, %s122
      %s123 = sphi 0, %s120
      %s124 = sphi 0, %s123
      %s140 = sphi 0, %s124
      %s146 = sphi 0, %s148
      %s149 = sphi 0, %s146
      %s150 = sphi 0, %s149
      %s166 = sphi 0, %s150
    $region4: #{causal_multiscale_flow_forward.3} parent=1 // loop_header_branch
      %14 = sbr.rel (%p12) target = $region8
    $region5: #{causal_multiscale_flow_forward.3} parent=1 // loop_body
      %s16 = ssub.s32 %s11, 1
      %s17 = ssub.s32 %s11, 2
      %s18 = sadd.s32 %s11, 1
      %s20 = sadd.s32 %s19, 1
      %p23 = scmp.eq.s32.totalorder %s11, 1
      %p24 = scmp.ne.s32.totalorder %s19, %s21
      %p25 = scmp.eq.s32.totalorder %s11, 0
      %p26 = por %p24, %p25
      %p27 = scmp.ne.s32.totalorder %s19, %s21
      %p28 = scmp.eq.s32.totalorder %s16, 1
      %p29 = por %p27, %p28
      %p30 = scmp.ne.s32.totalorder %s21, %s22
      %p31 = scmp.eq.s32.totalorder %s16, 0
      %p32 = por %p30, %p31
      %p33 = scmp.ne.s32.totalorder %s21, %s22
      %p34 = scmp.eq.s32.totalorder %s17, 1
      %p35 = por %p33, %p34
      %p37 = scmp.ne.s32.totalorder %s22, %s36
      %p38 = scmp.eq.s32.totalorder %s17, 0
      %p39 = por %p37, %p38
      %s40 = ssub.s32 %s11, %s18
      %p41 = scmp.eq.s32.totalorder %s40, 0
      %s43 = sadd.s32 %s42, 1
      %s44 = scalar_select %p41, %s42, %s43
      %p47 = pneg %p41
      %p48 = scmp.eq.s32.totalorder %s11, 1
      %p49 = por %p47, %p48
      %p50 = scmp.ne.s32.totalorder %s42, %s45
      %p51 = scmp.eq.s32.totalorder %s11, 0
      %p52 = por %p50, %p51
      %p53 = scmp.ne.s32.totalorder %s42, %s45
      %p54 = scmp.eq.s32.totalorder %s16, 1
      %p55 = por %p53, %p54
      %p56 = scmp.ne.s32.totalorder %s45, %s46
      %p57 = scmp.eq.s32.totalorder %s16, 0
      %p58 = por %p56, %p57
      %p59 = scmp.ne.s32.totalorder %s45, %s46
      %p60 = scmp.eq.s32.totalorder %s17, 1
      %p61 = por %p59, %p60
      %p63 = scmp.ne.s32.totalorder %s46, %s62
      %p64 = scmp.eq.s32.totalorder %s17, 0
      %p65 = por %p63, %p64
      %s66 = ssub.s32 %s11, %s18
      %p67 = scmp.eq.s32.totalorder %s66, 0
      %s69 = sadd.s32 %s68, 1
      %s70 = scalar_select %p67, %s68, %s69
      %p73 = pneg %p67
      %p74 = scmp.eq.s32.totalorder %s11, 1
      %p75 = por %p73, %p74
      %p76 = scmp.ne.s32.totalorder %s68, %s71
      %p77 = scmp.eq.s32.totalorder %s11, 0
      %p78 = por %p76, %p77
      %p79 = scmp.ne.s32.totalorder %s68, %s71
      %p80 = scmp.eq.s32.totalorder %s16, 1
      %p81 = por %p79, %p80
      %p82 = scmp.ne.s32.totalorder %s71, %s72
      %p83 = scmp.eq.s32.totalorder %s16, 0
      %p84 = por %p82, %p83
      %p85 = scmp.ne.s32.totalorder %s71, %s72
      %p86 = scmp.eq.s32.totalorder %s17, 1
      %p87 = por %p85, %p86
      %p89 = scmp.ne.s32.totalorder %s72, %s88
      %p90 = scmp.eq.s32.totalorder %s17, 0
      %p91 = por %p89, %p90
      %s92 = ssub.s32 %s11, %s18
      %p93 = scmp.eq.s32.totalorder %s92, 0
      %s95 = sadd.s32 %s94, 1
      %s96 = scalar_select %p93, %s94, %s95
      %p99 = pneg %p93
      %p100 = scmp.eq.s32.totalorder %s11, 1
      %p101 = por %p99, %p100
      %p102 = scmp.ne.s32.totalorder %s94, %s97
      %p103 = scmp.eq.s32.totalorder %s11, 0
      %p104 = por %p102, %p103
      %p105 = scmp.ne.s32.totalorder %s94, %s97
      %p106 = scmp.eq.s32.totalorder %s16, 1
      %p107 = por %p105, %p106
      %p108 = scmp.ne.s32.totalorder %s97, %s98
      %p109 = scmp.eq.s32.totalorder %s16, 0
      %p110 = por %p108, %p109
      %p111 = scmp.ne.s32.totalorder %s97, %s98
      %p112 = scmp.eq.s32.totalorder %s17, 1
      %p113 = por %p111, %p112
      %p115 = scmp.ne.s32.totalorder %s98, %s114
      %p116 = scmp.eq.s32.totalorder %s17, 0
      %p117 = por %p115, %p116
      %s118 = ssub.s32 %s11, %s18
      %p119 = scmp.eq.s32.totalorder %s118, 0
      %s121 = sadd.s32 %s120, 1
      %s122 = scalar_select %p119, %s120, %s121
      %p125 = pneg %p119
      %p126 = scmp.eq.s32.totalorder %s11, 1
      %p127 = por %p125, %p126
      %p128 = scmp.ne.s32.totalorder %s120, %s123
      %p129 = scmp.eq.s32.totalorder %s11, 0
      %p130 = por %p128, %p129
      %p131 = scmp.ne.s32.totalorder %s120, %s123
      %p132 = scmp.eq.s32.totalorder %s16, 1
      %p133 = por %p131, %p132
      %p134 = scmp.ne.s32.totalorder %s123, %s124
      %p135 = scmp.eq.s32.totalorder %s16, 0
      %p136 = por %p134, %p135
      %p137 = scmp.ne.s32.totalorder %s123, %s124
      %p138 = scmp.eq.s32.totalorder %s17, 1
      %p139 = por %p137, %p138
      %p141 = scmp.ne.s32.totalorder %s124, %s140
      %p142 = scmp.eq.s32.totalorder %s17, 0
      %p143 = por %p141, %p142
      %s144 = ssub.s32 %s11, %s18
      %p145 = scmp.eq.s32.totalorder %s144, 0
      %s147 = sadd.s32 %s146, 1
      %s148 = scalar_select %p145, %s146, %s147
      %p151 = pneg %p145
      %p152 = scmp.eq.s32.totalorder %s11, 1
      %p153 = por %p151, %p152
      %p154 = scmp.ne.s32.totalorder %s146, %s149
      %p155 = scmp.eq.s32.totalorder %s11, 0
      %p156 = por %p154, %p155
      %p157 = scmp.ne.s32.totalorder %s146, %s149
      %p158 = scmp.eq.s32.totalorder %s16, 1
      %p159 = por %p157, %p158
      %p160 = scmp.ne.s32.totalorder %s149, %s150
      %p161 = scmp.eq.s32.totalorder %s16, 0
      %p162 = por %p160, %p161
      %p163 = scmp.ne.s32.totalorder %s149, %s150
      %p164 = scmp.eq.s32.totalorder %s17, 1
      %p165 = por %p163, %p164
      %p167 = scmp.ne.s32.totalorder %s150, %s166
      %p168 = scmp.eq.s32.totalorder %s17, 0
      %p169 = por %p167, %p168
      %p170 = scmp.le.s32.totalorder 1, %s11
      %p171 = scmp.lt.s32.totalorder %s11, 3
      %p172 = pnand %p170, %p171
      %p173 = pneg %p172
      // Predicated region
      $region9: #{causal_multiscale_flow_forward.3} parent=5 // pred_check
        _
      $region10: #{causal_multiscale_flow_forward.3} parent=5 // pred_check_branch
        %175 = sbr.rel (%p172) target = $region12
      $region11: #{causal_multiscale_flow_forward.3} parent=5 // pred_region
        %s176 = ssub.s32 %s11, 1
        // Predicated region
        $region13: #{causal_multiscale_flow_forward.3} parent=11 // pred_check
          %p177 = pneg %p32
        $region14: #{causal_multiscale_flow_forward.3} parent=11 // pred_check_branch
          %179 = sbr.rel (%p177) target = $region16
        $region15: #{causal_multiscale_flow_forward.3} parent=11 // pred_region
          _
        $region16: #{causal_multiscale_flow_forward.3} parent=11 // pred_fallthru
          _
      $region12: #{causal_multiscale_flow_forward.3} parent=5 // pred_fallthru
        _
      %p180 = scmp.lt.s32.totalorder %s11, 2
      // Predicated region
      $region17: #{causal_multiscale_flow_forward.3} parent=5 // pred_check
        %p181 = pneg %p180
      $region18: #{causal_multiscale_flow_forward.3} parent=5 // pred_check_branch
        %183 = sbr.rel (%p181) target = $region20
      $region19: #{causal_multiscale_flow_forward.3} parent=5 // pred_region
        // Predicated region
        $region21: #{causal_multiscale_flow_forward.3} parent=19 // pred_check
          %p184 = pneg %p52
        $region22: #{causal_multiscale_flow_forward.3} parent=19 // pred_check_branch
          %186 = sbr.rel (%p184) target = $region24
        $region23: #{causal_multiscale_flow_forward.3} parent=19 // pred_region
          %s187 = sand.u32 %s42, 1
          %s188 = sand.u32 %s42, 1
          %s189 = smul.addr %s188, 1024
          %s190 = scalar_lea.vmem [#allocation2], %s189
          %s191 = smul.u32 4, %s11
          %s192 = smul.addr %s191, 4
          %s193 = scalar_lea.vmem %s1, %s192
          // Predicated region
          $region25: #{causal_multiscale_flow_forward.3} parent=23 // pred_check
            _
          $region26: #{causal_multiscale_flow_forward.3} parent=23 // pred_check_branch
            %195 = sbr.rel (0) target = $region28
          $region27: #{causal_multiscale_flow_forward.3} parent=23 // pred_region
            // Predicated region
            $region29: #{causal_multiscale_flow_forward.3} parent=27 // pred_check
              _
            $region30: #{causal_multiscale_flow_forward.3} parent=27 // pred_check_branch
              %197 = sbr.rel (0) target = $region32
            $region31: #{causal_multiscale_flow_forward.3} parent=27 // pred_region
              loop: start=0, step=1, limit=1
              $region33: #{causal_multiscale_flow_forward.3} parent=31 // loop_pre_header
                _
              $region34: #{causal_multiscale_flow_forward.3} parent=31 // loop_header
                %s199 = sphi 0, %s203
                %p200 = scmp.ge.s32.totalorder %s199, 1
                %s204 = sphi %s193, %s193
                %s205 = sphi %s190, %s190
              $region35: #{causal_multiscale_flow_forward.3} parent=31 // loop_header_branch
                %202 = sbr.rel (%p200) target = $region39
              $region36: #{causal_multiscale_flow_forward.3} parent=31 // loop_body
                %v206 = vld [vmem:[%s204] sm:$0xff]
                %207 = vst [vmem:[%s205] sm:$0xff] %v206
                %v208 = vld [vmem:[%s204 + $0x8] sm:$0xff]
                %209 = vst [vmem:[%s205 + $0x8] sm:$0xff] %v208
                %v210 = vld [vmem:[%s204 + $0x20] sm:$0xff]
                %211 = vst [vmem:[%s205 + $0x10] sm:$0xff] %v210
                %v212 = vld [vmem:[%s204 + $0x28] sm:$0xff]
                %213 = vst [vmem:[%s205 + $0x18] sm:$0xff] %v212
                %v214 = vld [vmem:[%s204 + $0x40] sm:$0xff]
                %215 = vst [vmem:[%s205 + $0x20] sm:$0xff] %v214
                %v216 = vld [vmem:[%s204 + $0x48] sm:$0xff]
                %217 = vst [vmem:[%s205 + $0x28] sm:$0xff] %v216
                %v218 = vld [vmem:[%s204 + $0x60] sm:$0xff]
                %219 = vst [vmem:[%s205 + $0x30] sm:$0xff] %v218
                %v220 = vld [vmem:[%s204 + $0x68] sm:$0xff]
                %221 = vst [vmem:[%s205 + $0x38] sm:$0xff] %v220
                %v222 = vld [vmem:[%s204 + $0x80] sm:$0xff]
                %223 = vst [vmem:[%s205 + $0x40] sm:$0xff] %v222
                %v224 = vld [vmem:[%s204 + $0x88] sm:$0xff]
                %225 = vst [vmem:[%s205 + $0x48] sm:$0xff] %v224
                %v226 = vld [vmem:[%s204 + $0xa0] sm:$0xff]
                %227 = vst [vmem:[%s205 + $0x50] sm:$0xff] %v226
                %v228 = vld [vmem:[%s204 + $0xa8] sm:$0xff]
                %229 = vst [vmem:[%s205 + $0x58] sm:$0xff] %v228
                %v230 = vld [vmem:[%s204 + $0xc0] sm:$0xff]
                %231 = vst [vmem:[%s205 + $0x60] sm:$0xff] %v230
                %v232 = vld [vmem:[%s204 + $0xc8] sm:$0xff]
                %233 = vst [vmem:[%s205 + $0x68] sm:$0xff] %v232
                %v234 = vld [vmem:[%s204 + $0xe0] sm:$0xff]
                %235 = vst [vmem:[%s205 + $0x70] sm:$0xff] %v234
                %v236 = vld [vmem:[%s204 + $0xe8] sm:$0xff]
                %237 = vst [vmem:[%s205 + $0x78] sm:$0xff] %v236
                %v238 = vld [vmem:[%s204 + $0x100] sm:$0xff]
                %239 = vst [vmem:[%s205 + $0x80] sm:$0xff] %v238
                %v240 = vld [vmem:[%s204 + $0x108] sm:$0xff]
                %241 = vst [vmem:[%s205 + $0x88] sm:$0xff] %v240
                %v242 = vld [vmem:[%s204 + $0x120] sm:$0xff]
                %243 = vst [vmem:[%s205 + $0x90] sm:$0xff] %v242
                %v244 = vld [vmem:[%s204 + $0x128] sm:$0xff]
                %245 = vst [vmem:[%s205 + $0x98] sm:$0xff] %v244
                %v246 = vld [vmem:[%s204 + $0x140] sm:$0xff]
                %247 = vst [vmem:[%s205 + $0xa0] sm:$0xff] %v246
                %v248 = vld [vmem:[%s204 + $0x148] sm:$0xff]
                %249 = vst [vmem:[%s205 + $0xa8] sm:$0xff] %v248
                %v250 = vld [vmem:[%s204 + $0x160] sm:$0xff]
                %251 = vst [vmem:[%s205 + $0xb0] sm:$0xff] %v250
                %v252 = vld [vmem:[%s204 + $0x168] sm:$0xff]
                %253 = vst [vmem:[%s205 + $0xb8] sm:$0xff] %v252
                %v254 = vld [vmem:[%s204 + $0x180] sm:$0xff]
                %255 = vst [vmem:[%s205 + $0xc0] sm:$0xff] %v254
                %v256 = vld [vmem:[%s204 + $0x188] sm:$0xff]
                %257 = vst [vmem:[%s205 + $0xc8] sm:$0xff] %v256
                %v258 = vld [vmem:[%s204 + $0x1a0] sm:$0xff]
                %259 = vst [vmem:[%s205 + $0xd0] sm:$0xff] %v258
                %v260 = vld [vmem:[%s204 + $0x1a8] sm:$0xff]
                %261 = vst [vmem:[%s205 + $0xd8] sm:$0xff] %v260
                %v262 = vld [vmem:[%s204 + $0x1c0] sm:$0xff]
                %263 = vst [vmem:[%s205 + $0xe0] sm:$0xff] %v262
                %v264 = vld [vmem:[%s204 + $0x1c8] sm:$0xff]
                %265 = vst [vmem:[%s205 + $0xe8] sm:$0xff] %v264
                %v266 = vld [vmem:[%s204 + $0x1e0] sm:$0xff]
                %267 = vst [vmem:[%s205 + $0xf0] sm:$0xff] %v266
                %v268 = vld [vmem:[%s204 + $0x1e8] sm:$0xff]
                %269 = vst [vmem:[%s205 + $0xf8] sm:$0xff] %v268
                %v270 = vld [vmem:[%s204 + $0x200] sm:$0xff]
                %271 = vst [vmem:[%s205 + $0x100] sm:$0xff] %v270
                %v272 = vld [vmem:[%s204 + $0x208] sm:$0xff]
                %273 = vst [vmem:[%s205 + $0x108] sm:$0xff] %v272
                %v274 = vld [vmem:[%s204 + $0x220] sm:$0xff]
                %275 = vst [vmem:[%s205 + $0x110] sm:$0xff] %v274
                %v276 = vld [vmem:[%s204 + $0x228] sm:$0xff]
                %277 = vst [vmem:[%s205 + $0x118] sm:$0xff] %v276
                %v278 = vld [vmem:[%s204 + $0x240] sm:$0xff]
                %279 = vst [vmem:[%s205 + $0x120] sm:$0xff] %v278
                %v280 = vld [vmem:[%s204 + $0x248] sm:$0xff]
                %281 = vst [vmem:[%s205 + $0x128] sm:$0xff] %v280
                %v282 = vld [vmem:[%s204 + $0x260] sm:$0xff]
                %283 = vst [vmem:[%s205 + $0x130] sm:$0xff] %v282
                %v284 = vld [vmem:[%s204 + $0x268] sm:$0xff]
                %285 = vst [vmem:[%s205 + $0x138] sm:$0xff] %v284
                %v286 = vld [vmem:[%s204 + $0x280] sm:$0xff]
                %287 = vst [vmem:[%s205 + $0x140] sm:$0xff] %v286
                %v288 = vld [vmem:[%s204 + $0x288] sm:$0xff]
                %289 = vst [vmem:[%s205 + $0x148] sm:$0xff] %v288
                %v290 = vld [vmem:[%s204 + $0x2a0] sm:$0xff]
                %291 = vst [vmem:[%s205 + $0x150] sm:$0xff] %v290
                %v292 = vld [vmem:[%s204 + $0x2a8] sm:$0xff]
                %293 = vst [vmem:[%s205 + $0x158] sm:$0xff] %v292
                %v294 = vld [vmem:[%s204 + $0x2c0] sm:$0xff]
                %295 = vst [vmem:[%s205 + $0x160] sm:$0xff] %v294
                %v296 = vld [vmem:[%s204 + $0x2c8] sm:$0xff]
                %297 = vst [vmem:[%s205 + $0x168] sm:$0xff] %v296
                %v298 = vld [vmem:[%s204 + $0x2e0] sm:$0xff]
                %299 = vst [vmem:[%s205 + $0x170] sm:$0xff] %v298
                %v300 = vld [vmem:[%s204 + $0x2e8] sm:$0xff]
                %301 = vst [vmem:[%s205 + $0x178] sm:$0xff] %v300
                %v302 = vld [vmem:[%s204 + $0x300] sm:$0xff]
                %303 = vst [vmem:[%s205 + $0x180] sm:$0xff] %v302
                %v304 = vld [vmem:[%s204 + $0x308] sm:$0xff]
                %305 = vst [vmem:[%s205 + $0x188] sm:$0xff] %v304
                %v306 = vld [vmem:[%s204 + $0x320] sm:$0xff]
                %307 = vst [vmem:[%s205 + $0x190] sm:$0xff] %v306
                %v308 = vld [vmem:[%s204 + $0x328] sm:$0xff]
                %309 = vst [vmem:[%s205 + $0x198] sm:$0xff] %v308
                %v310 = vld [vmem:[%s204 + $0x340] sm:$0xff]
                %311 = vst [vmem:[%s205 + $0x1a0] sm:$0xff] %v310
                %v312 = vld [vmem:[%s204 + $0x348] sm:$0xff]
                %313 = vst [vmem:[%s205 + $0x1a8] sm:$0xff] %v312
                %v314 = vld [vmem:[%s204 + $0x360] sm:$0xff]
                %315 = vst [vmem:[%s205 + $0x1b0] sm:$0xff] %v314
                %v316 = vld [vmem:[%s204 + $0x368] sm:$0xff]
                %317 = vst [vmem:[%s205 + $0x1b8] sm:$0xff] %v316
                %v318 = vld [vmem:[%s204 + $0x380] sm:$0xff]
                %319 = vst [vmem:[%s205 + $0x1c0] sm:$0xff] %v318
                %v320 = vld [vmem:[%s204 + $0x388] sm:$0xff]
                %321 = vst [vmem:[%s205 + $0x1c8] sm:$0xff] %v320
                %v322 = vld [vmem:[%s204 + $0x3a0] sm:$0xff]
                %323 = vst [vmem:[%s205 + $0x1d0] sm:$0xff] %v322
                %v324 = vld [vmem:[%s204 + $0x3a8] sm:$0xff]
                %325 = vst [vmem:[%s205 + $0x1d8] sm:$0xff] %v324
                %v326 = vld [vmem:[%s204 + $0x3c0] sm:$0xff]
                %327 = vst [vmem:[%s205 + $0x1e0] sm:$0xff] %v326
                %v328 = vld [vmem:[%s204 + $0x3c8] sm:$0xff]
                %329 = vst [vmem:[%s205 + $0x1e8] sm:$0xff] %v328
                %v330 = vld [vmem:[%s204 + $0x3e0] sm:$0xff]
                %331 = vst [vmem:[%s205 + $0x1f0] sm:$0xff] %v330
                %v332 = vld [vmem:[%s204 + $0x3e8] sm:$0xff]
                %333 = vst [vmem:[%s205 + $0x1f8] sm:$0xff] %v332
                %v334 = vld [vmem:[%s204 + $0x400] sm:$0xff]
                %335 = vst [vmem:[%s205 + $0x200] sm:$0xff] %v334
                %v336 = vld [vmem:[%s204 + $0x408] sm:$0xff]
                %337 = vst [vmem:[%s205 + $0x208] sm:$0xff] %v336
                %v338 = vld [vmem:[%s204 + $0x420] sm:$0xff]
                %339 = vst [vmem:[%s205 + $0x210] sm:$0xff] %v338
                %v340 = vld [vmem:[%s204 + $0x428] sm:$0xff]
                %341 = vst [vmem:[%s205 + $0x218] sm:$0xff] %v340
                %v342 = vld [vmem:[%s204 + $0x440] sm:$0xff]
                %343 = vst [vmem:[%s205 + $0x220] sm:$0xff] %v342
                %v344 = vld [vmem:[%s204 + $0x448] sm:$0xff]
                %345 = vst [vmem:[%s205 + $0x228] sm:$0xff] %v344
                %v346 = vld [vmem:[%s204 + $0x460] sm:$0xff]
                %347 = vst [vmem:[%s205 + $0x230] sm:$0xff] %v346
                %v348 = vld [vmem:[%s204 + $0x468] sm:$0xff]
                %349 = vst [vmem:[%s205 + $0x238] sm:$0xff] %v348
                %v350 = vld [vmem:[%s204 + $0x480] sm:$0xff]
                %351 = vst [vmem:[%s205 + $0x240] sm:$0xff] %v350
                %v352 = vld [vmem:[%s204 + $0x488] sm:$0xff]
                %353 = vst [vmem:[%s205 + $0x248] sm:$0xff] %v352
                %v354 = vld [vmem:[%s204 + $0x4a0] sm:$0xff]
                %355 = vst [vmem:[%s205 + $0x250] sm:$0xff] %v354
                %v356 = vld [vmem:[%s204 + $0x4a8] sm:$0xff]
                %357 = vst [vmem:[%s205 + $0x258] sm:$0xff] %v356
                %v358 = vld [vmem:[%s204 + $0x4c0] sm:$0xff]
                %359 = vst [vmem:[%s205 + $0x260] sm:$0xff] %v358
                %v360 = vld [vmem:[%s204 + $0x4c8] sm:$0xff]
                %361 = vst [vmem:[%s205 + $0x268] sm:$0xff] %v360
                %v362 = vld [vmem:[%s204 + $0x4e0] sm:$0xff]
                %363 = vst [vmem:[%s205 + $0x270] sm:$0xff] %v362
                %v364 = vld [vmem:[%s204 + $0x4e8] sm:$0xff]
                %365 = vst [vmem:[%s205 + $0x278] sm:$0xff] %v364
                %v366 = vld [vmem:[%s204 + $0x500] sm:$0xff]
                %367 = vst [vmem:[%s205 + $0x280] sm:$0xff] %v366
                %v368 = vld [vmem:[%s204 + $0x508] sm:$0xff]
                %369 = vst [vmem:[%s205 + $0x288] sm:$0xff] %v368
                %v370 = vld [vmem:[%s204 + $0x520] sm:$0xff]
                %371 = vst [vmem:[%s205 + $0x290] sm:$0xff] %v370
                %v372 = vld [vmem:[%s204 + $0x528] sm:$0xff]
                %373 = vst [vmem:[%s205 + $0x298] sm:$0xff] %v372
                %v374 = vld [vmem:[%s204 + $0x540] sm:$0xff]
                %375 = vst [vmem:[%s205 + $0x2a0] sm:$0xff] %v374
                %v376 = vld [vmem:[%s204 + $0x548] sm:$0xff]
                %377 = vst [vmem:[%s205 + $0x2a8] sm:$0xff] %v376
                %v378 = vld [vmem:[%s204 + $0x560] sm:$0xff]
                %379 = vst [vmem:[%s205 + $0x2b0] sm:$0xff] %v378
                %v380 = vld [vmem:[%s204 + $0x568] sm:$0xff]
                %381 = vst [vmem:[%s205 + $0x2b8] sm:$0xff] %v380
                %v382 = vld [vmem:[%s204 + $0x580] sm:$0xff]
                %383 = vst [vmem:[%s205 + $0x2c0] sm:$0xff] %v382
                %v384 = vld [vmem:[%s204 + $0x588] sm:$0xff]
                %385 = vst [vmem:[%s205 + $0x2c8] sm:$0xff] %v384
                %v386 = vld [vmem:[%s204 + $0x5a0] sm:$0xff]
                %387 = vst [vmem:[%s205 + $0x2d0] sm:$0xff] %v386
                %v388 = vld [vmem:[%s204 + $0x5a8] sm:$0xff]
                %389 = vst [vmem:[%s205 + $0x2d8] sm:$0xff] %v388
                %v390 = vld [vmem:[%s204 + $0x5c0] sm:$0xff]
                %391 = vst [vmem:[%s205 + $0x2e0] sm:$0xff] %v390
                %v392 = vld [vmem:[%s204 + $0x5c8] sm:$0xff]
                %393 = vst [vmem:[%s205 + $0x2e8] sm:$0xff] %v392
                %v394 = vld [vmem:[%s204 + $0x5e0] sm:$0xff]
                %395 = vst [vmem:[%s205 + $0x2f0] sm:$0xff] %v394
                %v396 = vld [vmem:[%s204 + $0x5e8] sm:$0xff]
                %397 = vst [vmem:[%s205 + $0x2f8] sm:$0xff] %v396
                %v398 = vld [vmem:[%s204 + $0x600] sm:$0xff]
                %399 = vst [vmem:[%s205 + $0x300] sm:$0xff] %v398
                %v400 = vld [vmem:[%s204 + $0x608] sm:$0xff]
                %401 = vst [vmem:[%s205 + $0x308] sm:$0xff] %v400
                %v402 = vld [vmem:[%s204 + $0x620] sm:$0xff]
                %403 = vst [vmem:[%s205 + $0x310] sm:$0xff] %v402
                %v404 = vld [vmem:[%s204 + $0x628] sm:$0xff]
                %405 = vst [vmem:[%s205 + $0x318] sm:$0xff] %v404
                %v406 = vld [vmem:[%s204 + $0x640] sm:$0xff]
                %407 = vst [vmem:[%s205 + $0x320] sm:$0xff] %v406
                %v408 = vld [vmem:[%s204 + $0x648] sm:$0xff]
                %409 = vst [vmem:[%s205 + $0x328] sm:$0xff] %v408
                %v410 = vld [vmem:[%s204 + $0x660] sm:$0xff]
                %411 = vst [vmem:[%s205 + $0x330] sm:$0xff] %v410
                %v412 = vld [vmem:[%s204 + $0x668] sm:$0xff]
                %413 = vst [vmem:[%s205 + $0x338] sm:$0xff] %v412
                %v414 = vld [vmem:[%s204 + $0x680] sm:$0xff]
                %415 = vst [vmem:[%s205 + $0x340] sm:$0xff] %v414
                %v416 = vld [vmem:[%s204 + $0x688] sm:$0xff]
                %417 = vst [vmem:[%s205 + $0x348] sm:$0xff] %v416
                %v418 = vld [vmem:[%s204 + $0x6a0] sm:$0xff]
                %419 = vst [vmem:[%s205 + $0x350] sm:$0xff] %v418
                %v420 = vld [vmem:[%s204 + $0x6a8] sm:$0xff]
                %421 = vst [vmem:[%s205 + $0x358] sm:$0xff] %v420
                %v422 = vld [vmem:[%s204 + $0x6c0] sm:$0xff]
                %423 = vst [vmem:[%s205 + $0x360] sm:$0xff] %v422
                %v424 = vld [vmem:[%s204 + $0x6c8] sm:$0xff]
                %425 = vst [vmem:[%s205 + $0x368] sm:$0xff] %v424
                %v426 = vld [vmem:[%s204 + $0x6e0] sm:$0xff]
                %427 = vst [vmem:[%s205 + $0x370] sm:$0xff] %v426
                %v428 = vld [vmem:[%s204 + $0x6e8] sm:$0xff]
                %429 = vst [vmem:[%s205 + $0x378] sm:$0xff] %v428
                %v430 = vld [vmem:[%s204 + $0x700] sm:$0xff]
                %431 = vst [vmem:[%s205 + $0x380] sm:$0xff] %v430
                %v432 = vld [vmem:[%s204 + $0x708] sm:$0xff]
                %433 = vst [vmem:[%s205 + $0x388] sm:$0xff] %v432
                %v434 = vld [vmem:[%s204 + $0x720] sm:$0xff]
                %435 = vst [vmem:[%s205 + $0x390] sm:$0xff] %v434
                %v436 = vld [vmem:[%s204 + $0x728] sm:$0xff]
                %437 = vst [vmem:[%s205 + $0x398] sm:$0xff] %v436
                %v438 = vld [vmem:[%s204 + $0x740] sm:$0xff]
                %439 = vst [vmem:[%s205 + $0x3a0] sm:$0xff] %v438
                %v440 = vld [vmem:[%s204 + $0x748] sm:$0xff]
                %441 = vst [vmem:[%s205 + $0x3a8] sm:$0xff] %v440
                %v442 = vld [vmem:[%s204 + $0x760] sm:$0xff]
                %443 = vst [vmem:[%s205 + $0x3b0] sm:$0xff] %v442
                %v444 = vld [vmem:[%s204 + $0x768] sm:$0xff]
                %445 = vst [vmem:[%s205 + $0x3b8] sm:$0xff] %v444
                %v446 = vld [vmem:[%s204 + $0x780] sm:$0xff]
                %447 = vst [vmem:[%s205 + $0x3c0] sm:$0xff] %v446
                %v448 = vld [vmem:[%s204 + $0x788] sm:$0xff]
                %449 = vst [vmem:[%s205 + $0x3c8] sm:$0xff] %v448
                %v450 = vld [vmem:[%s204 + $0x7a0] sm:$0xff]
                %451 = vst [vmem:[%s205 + $0x3d0] sm:$0xff] %v450
                %v452 = vld [vmem:[%s204 + $0x7a8] sm:$0xff]
                %453 = vst [vmem:[%s205 + $0x3d8] sm:$0xff] %v452
                %v454 = vld [vmem:[%s204 + $0x7c0] sm:$0xff]
                %455 = vst [vmem:[%s205 + $0x3e0] sm:$0xff] %v454
                %v456 = vld [vmem:[%s204 + $0x7c8] sm:$0xff]
                %457 = vst [vmem:[%s205 + $0x3e8] sm:$0xff] %v456
                %v458 = vld [vmem:[%s204 + $0x7e0] sm:$0xff]
                %459 = vst [vmem:[%s205 + $0x3f0] sm:$0xff] %v458
                %v460 = vld [vmem:[%s204 + $0x7e8] sm:$0xff]
                %461 = vst [vmem:[%s205 + $0x3f8] sm:$0xff] %v460
              $region37: #{causal_multiscale_flow_forward.3} parent=31 // loop_footer
                %s203 = sadd.s32 1, %s199
              $region38: #{causal_multiscale_flow_forward.3} parent=31 // loop_footer_branch
                %198 = sbr.rel target = $region34
              $region39: #{causal_multiscale_flow_forward.3} parent=31 // loop_exit
                _
            $region32: #{causal_multiscale_flow_forward.3} parent=27 // pred_fallthru
              _
            // Predicated region
            $region40: #{causal_multiscale_flow_forward.3} parent=27 // pred_check
              _
            $region41: #{causal_multiscale_flow_forward.3} parent=27 // pred_check_branch
              %463 = sbr.rel target = $region43
            $region42: #{causal_multiscale_flow_forward.3} parent=27 // pred_region
              _
            $region43: #{causal_multiscale_flow_forward.3} parent=27 // pred_fallthru
              _
          $region28: #{causal_multiscale_flow_forward.3} parent=23 // pred_fallthru
            _
          %464 = vnop
        $region24: #{causal_multiscale_flow_forward.3} parent=19 // pred_fallthru
          _
        // Predicated region
        $region44: #{causal_multiscale_flow_forward.3} parent=19 // pred_check
          %p465 = pneg %p78
        $region45: #{causal_multiscale_flow_forward.3} parent=19 // pred_check_branch
          %467 = sbr.rel (%p465) target = $region47
        $region46: #{causal_multiscale_flow_forward.3} parent=19 // pred_region
          %s468 = smul.u32 4, %s11
          %p469 = scmp.lt.s32.totalorder %s468, 7
          %s470 = scalar_select %p469, %s468, 7
          %s471 = smul.addr %s470, 2
          %s472 = scalar_lea.vmem %s2, %s471
          %s473 = smul.u32 4, %s11
        $region47: #{causal_multiscale_flow_forward.3} parent=19 // pred_fallthru
          _
        // Predicated region
        $region48: #{causal_multiscale_flow_forward.3} parent=19 // pred_check
          %p474 = pneg %p104
        $region49: #{causal_multiscale_flow_forward.3} parent=19 // pred_check_branch
          %476 = sbr.rel (%p474) target = $region51
        $region50: #{causal_multiscale_flow_forward.3} parent=19 // pred_region
          %s477 = smul.u32 4, %s11
          %p478 = scmp.lt.s32.totalorder %s477, 7
          %s479 = scalar_select %p478, %s477, 7
          %s480 = scalar_lea.vmem %s3, %s479
          %s481 = smul.u32 4, %s11
        $region51: #{causal_multiscale_flow_forward.3} parent=19 // pred_fallthru
          _
        // Predicated region
        $region52: #{causal_multiscale_flow_forward.3} parent=19 // pred_check
          %p482 = pneg %p130
        $region53: #{causal_multiscale_flow_forward.3} parent=19 // pred_check_branch
          %484 = sbr.rel (%p482) target = $region55
        $region54: #{causal_multiscale_flow_forward.3} parent=19 // pred_region
          %s485 = smul.u32 4, %s11
          %p486 = scmp.lt.s32.totalorder %s485, 7
          %s487 = scalar_select %p486, %s485, 7
          %s488 = scalar_lea.vmem %s4, %s487
          %s489 = smul.u32 4, %s11
        $region55: #{causal_multiscale_flow_forward.3} parent=19 // pred_fallthru
          _
      $region20: #{causal_multiscale_flow_forward.3} parent=5 // pred_fallthru
        _
      %p490 = scmp.le.s32.totalorder 1, %s11
      %p491 = scmp.lt.s32.totalorder %s11, 3
      %p492 = pnand %p490, %p491
      %p493 = pneg %p492
      // Predicated region
      $region56: #{causal_multiscale_flow_forward.3} parent=5 // pred_check
        _
      $region57: #{causal_multiscale_flow_forward.3} parent=5 // pred_check_branch
        %495 = sbr.rel (%p492) target = $region59
      $region58: #{causal_multiscale_flow_forward.3} parent=5 // pred_region
        %s496 = ssub.s32 %s11, 1
        %s497 = sand.u32 %s45, 1
        %s498 = sand.u32 %s45, 1
        %s499 = smul.addr %s498, 1024
        %s500 = scalar_lea.vmem [#allocation2], %s499
        // Predicated region
        $region60: #{causal_multiscale_flow_forward.3} parent=58 // pred_check
          %p501 = pneg %p58
        $region61: #{causal_multiscale_flow_forward.3} parent=58 // pred_check_branch
          %503 = sbr.rel (%p501) target = $region63
        $region62: #{causal_multiscale_flow_forward.3} parent=58 // pred_region
          _
        $region63: #{causal_multiscale_flow_forward.3} parent=58 // pred_fallthru
          _
        %p504 = pneg %p32
        %p505 = pneg %p29
        %s506 = sand.u32 %s45, 1
        %s507 = sand.u32 %s45, 1
        %s508 = smul.addr %s507, 1024
        %s509 = scalar_lea.vmem [#allocation2], %s508
        %p510 = pneg %p58
        %p511 = pneg %p55
        %s512 = smul.u32 4, %s16
        %p513 = scmp.lt.s32.totalorder %s512, 7
        %s514 = scalar_select %p513, %s512, 7
        %s515 = smul.addr %s514, 2
        %s516 = scalar_lea.vmem %s2, %s515
        %p517 = pneg %p84
        %p518 = pneg %p81
        %s519 = smul.u32 4, %s16
        %p520 = scmp.lt.s32.totalorder %s519, 7
        %s521 = scalar_select %p520, %s519, 7
        %s522 = scalar_lea.vmem %s3, %s521
        %p523 = pneg %p110
        %p524 = pneg %p107
        %s525 = smul.u32 4, %s16
        %p526 = scmp.lt.s32.totalorder %s525, 7
        %s527 = scalar_select %p526, %s525, 7
        %s528 = scalar_lea.vmem %s4, %s527
        %p529 = pneg %p136
        %p530 = pneg %p133
        %p531 = pneg %p162
        %p532 = pneg %p159
        %p533 = scmp.lt.s32.totalorder %s16, 1
        %s534 = scalar_select %p533, %s16, 1
        %s535 = smul.addr %s534, 2
        %s536 = scalar_lea.vmem %s5, %s535
        %s537 = smul.u32 4, %s16
        %s538 = smul.u32 4, %s16
        %p539 = scmp.lt.s32.totalorder %s538, 7
        %s540 = scalar_select %p539, %s538, 7
        %s541 = smul.addr %s540, 2
        %s542 = scalar_lea.vmem %s2, %s541
        %s543 = smul.u32 4, %s16
        %s544 = smul.u32 4, %s16
        %p545 = scmp.lt.s32.totalorder %s544, 7
        %s546 = scalar_select %p545, %s544, 7
        %s547 = scalar_lea.vmem %s3, %s546
        %s548 = smul.u32 4, %s16
        %s549 = smul.u32 4, %s16
        %p550 = scmp.lt.s32.totalorder %s549, 7
        %s551 = scalar_select %p550, %s549, 7
        %s552 = scalar_lea.vmem %s4, %s551
        %s553 = smul.u32 4, %s16
        %p554 = scmp.lt.s32.totalorder %s16, 1
        %s555 = scalar_select %p554, %s16, 1
        %s556 = smul.addr %s555, 2
        %s557 = scalar_lea.vmem %s5, %s556
        %v558 = vld [vmem:[%s0] sm:$0xff]
        %v560 = vcombine.high %v558, %v558
        %v562 = vunpack.c.l.s4 1983009808
        %v563 = vunpack.c.0.s8 %v562
        %v564 = vlaneseq
        %v565 = vshrl.u32 %v564, 7
        %v566 = vsub.s32 %v563, %v565
        %v567 = vrot.slane %v558, %v566
        %v569 = vunpack.c.l.s4 1983009808
        %v570 = vunpack.c.0.s8 %v569
        %v571 = vlaneseq
        %v572 = vshrl.u32 %v571, 7
        %v573 = vsub.s32 %v570, %v572
        %v574 = vrot.slane %v560, %v573
        %v575 = vcombine.high %v567, %v567
        %v576 = vcombine.high %v574, %v574
        %v581 = vpack.c.bf16 %v567, %v567
        %v582 = vpack.c.bf16 %v575, %v575
        %v583 = vpack.c.bf16 %v574, %v574
        %v584 = vpack.c.bf16 %v576, %v576
        %v585 = vld [vmem:[%s500] sm:$0xff]
        %v586 = vld [vmem:[%s500 + $0x8] sm:$0xff]
        %v587 = vld [vmem:[%s500 + $0x10] sm:$0xff]
        %v588 = vld [vmem:[%s500 + $0x18] sm:$0xff]
        %v589 = vld [vmem:[%s500 + $0x20] sm:$0xff]
        %v590 = vld [vmem:[%s500 + $0x28] sm:$0xff]
        %v591 = vld [vmem:[%s500 + $0x30] sm:$0xff]
        %v592 = vld [vmem:[%s500 + $0x38] sm:$0xff]
        %v593 = vld [vmem:[%s500 + $0x40] sm:$0xff]
        %v594 = vld [vmem:[%s500 + $0x48] sm:$0xff]
        %v595 = vld [vmem:[%s500 + $0x50] sm:$0xff]
        %v596 = vld [vmem:[%s500 + $0x58] sm:$0xff]
        %v597 = vld [vmem:[%s500 + $0x60] sm:$0xff]
        %v598 = vld [vmem:[%s500 + $0x68] sm:$0xff]
        %v599 = vld [vmem:[%s500 + $0x70] sm:$0xff]
        %v600 = vld [vmem:[%s500 + $0x78] sm:$0xff]
        %v601 = vld [vmem:[%s500 + $0x80] sm:$0xff]
        %v602 = vld [vmem:[%s500 + $0x88] sm:$0xff]
        %v603 = vld [vmem:[%s500 + $0x90] sm:$0xff]
        %v604 = vld [vmem:[%s500 + $0x98] sm:$0xff]
        %v605 = vld [vmem:[%s500 + $0xa0] sm:$0xff]
        %v606 = vld [vmem:[%s500 + $0xa8] sm:$0xff]
        %v607 = vld [vmem:[%s500 + $0xb0] sm:$0xff]
        %v608 = vld [vmem:[%s500 + $0xb8] sm:$0xff]
        %v609 = vld [vmem:[%s500 + $0xc0] sm:$0xff]
        %v610 = vld [vmem:[%s500 + $0xc8] sm:$0xff]
        %v611 = vld [vmem:[%s500 + $0xd0] sm:$0xff]
        %v612 = vld [vmem:[%s500 + $0xd8] sm:$0xff]
        %v613 = vld [vmem:[%s500 + $0xe0] sm:$0xff]
        %v614 = vld [vmem:[%s500 + $0xe8] sm:$0xff]
        %v615 = vld [vmem:[%s500 + $0xf0] sm:$0xff]
        %v616 = vld [vmem:[%s500 + $0xf8] sm:$0xff]
        %v617 = vld [vmem:[%s500 + $0x100] sm:$0xff]
        %v618 = vld [vmem:[%s500 + $0x108] sm:$0xff]
        %v619 = vld [vmem:[%s500 + $0x110] sm:$0xff]
        %v620 = vld [vmem:[%s500 + $0x118] sm:$0xff]
        %v621 = vld [vmem:[%s500 + $0x120] sm:$0xff]
        %v622 = vld [vmem:[%s500 + $0x128] sm:$0xff]
        %v623 = vld [vmem:[%s500 + $0x130] sm:$0xff]
        %v624 = vld [vmem:[%s500 + $0x138] sm:$0xff]
        %v625 = vld [vmem:[%s500 + $0x140] sm:$0xff]
        %v626 = vld [vmem:[%s500 + $0x148] sm:$0xff]
        %v627 = vld [vmem:[%s500 + $0x150] sm:$0xff]
        %v628 = vld [vmem:[%s500 + $0x158] sm:$0xff]
        %v629 = vld [vmem:[%s500 + $0x160] sm:$0xff]
        %v630 = vld [vmem:[%s500 + $0x168] sm:$0xff]
        %v631 = vld [vmem:[%s500 + $0x170] sm:$0xff]
        %v632 = vld [vmem:[%s500 + $0x178] sm:$0xff]
        %v633 = vld [vmem:[%s500 + $0x180] sm:$0xff]
        %v634 = vld [vmem:[%s500 + $0x188] sm:$0xff]
        %v635 = vld [vmem:[%s500 + $0x190] sm:$0xff]
        %v636 = vld [vmem:[%s500 + $0x198] sm:$0xff]
        %v637 = vld [vmem:[%s500 + $0x1a0] sm:$0xff]
        %v638 = vld [vmem:[%s500 + $0x1a8] sm:$0xff]
        %v639 = vld [vmem:[%s500 + $0x1b0] sm:$0xff]
        %v640 = vld [vmem:[%s500 + $0x1b8] sm:$0xff]
        %v641 = vld [vmem:[%s500 + $0x1c0] sm:$0xff]
        %v642 = vld [vmem:[%s500 + $0x1c8] sm:$0xff]
        %v643 = vld [vmem:[%s500 + $0x1d0] sm:$0xff]
        %v644 = vld [vmem:[%s500 + $0x1d8] sm:$0xff]
        %v645 = vld [vmem:[%s500 + $0x1e0] sm:$0xff]
        %v646 = vld [vmem:[%s500 + $0x1e8] sm:$0xff]
        %v647 = vld [vmem:[%s500 + $0x1f0] sm:$0xff]
        %v648 = vld [vmem:[%s500 + $0x1f8] sm:$0xff]
        %v649 = vld [vmem:[%s500 + $0x200] sm:$0xff]
        %v650 = vld [vmem:[%s500 + $0x208] sm:$0xff]
        %v651 = vld [vmem:[%s500 + $0x210] sm:$0xff]
        %v652 = vld [vmem:[%s500 + $0x218] sm:$0xff]
        %v653 = vld [vmem:[%s500 + $0x220] sm:$0xff]
        %v654 = vld [vmem:[%s500 + $0x228] sm:$0xff]
        %v655 = vld [vmem:[%s500 + $0x230] sm:$0xff]
        %v656 = vld [vmem:[%s500 + $0x238] sm:$0xff]
        %v657 = vld [vmem:[%s500 + $0x240] sm:$0xff]
        %v658 = vld [vmem:[%s500 + $0x248] sm:$0xff]
        %v659 = vld [vmem:[%s500 + $0x250] sm:$0xff]
        %v660 = vld [vmem:[%s500 + $0x258] sm:$0xff]
        %v661 = vld [vmem:[%s500 + $0x260] sm:$0xff]
        %v662 = vld [vmem:[%s500 + $0x268] sm:$0xff]
        %v663 = vld [vmem:[%s500 + $0x270] sm:$0xff]
        %v664 = vld [vmem:[%s500 + $0x278] sm:$0xff]
        %v665 = vld [vmem:[%s500 + $0x280] sm:$0xff]
        %v666 = vld [vmem:[%s500 + $0x288] sm:$0xff]
        %v667 = vld [vmem:[%s500 + $0x290] sm:$0xff]
        %v668 = vld [vmem:[%s500 + $0x298] sm:$0xff]
        %v669 = vld [vmem:[%s500 + $0x2a0] sm:$0xff]
        %v670 = vld [vmem:[%s500 + $0x2a8] sm:$0xff]
        %v671 = vld [vmem:[%s500 + $0x2b0] sm:$0xff]
        %v672 = vld [vmem:[%s500 + $0x2b8] sm:$0xff]
        %v673 = vld [vmem:[%s500 + $0x2c0] sm:$0xff]
        %v674 = vld [vmem:[%s500 + $0x2c8] sm:$0xff]
        %v675 = vld [vmem:[%s500 + $0x2d0] sm:$0xff]
        %v676 = vld [vmem:[%s500 + $0x2d8] sm:$0xff]
        %v677 = vld [vmem:[%s500 + $0x2e0] sm:$0xff]
        %v678 = vld [vmem:[%s500 + $0x2e8] sm:$0xff]
        %v679 = vld [vmem:[%s500 + $0x2f0] sm:$0xff]
        %v680 = vld [vmem:[%s500 + $0x2f8] sm:$0xff]
        %v681 = vld [vmem:[%s500 + $0x300] sm:$0xff]
        %v682 = vld [vmem:[%s500 + $0x308] sm:$0xff]
        %v683 = vld [vmem:[%s500 + $0x310] sm:$0xff]
        %v684 = vld [vmem:[%s500 + $0x318] sm:$0xff]
        %v685 = vld [vmem:[%s500 + $0x320] sm:$0xff]
        %v686 = vld [vmem:[%s500 + $0x328] sm:$0xff]
        %v687 = vld [vmem:[%s500 + $0x330] sm:$0xff]
        %v688 = vld [vmem:[%s500 + $0x338] sm:$0xff]
        %v689 = vld [vmem:[%s500 + $0x340] sm:$0xff]
        %v690 = vld [vmem:[%s500 + $0x348] sm:$0xff]
        %v691 = vld [vmem:[%s500 + $0x350] sm:$0xff]
        %v692 = vld [vmem:[%s500 + $0x358] sm:$0xff]
        %v693 = vld [vmem:[%s500 + $0x360] sm:$0xff]
        %v694 = vld [vmem:[%s500 + $0x368] sm:$0xff]
        %v695 = vld [vmem:[%s500 + $0x370] sm:$0xff]
        %v696 = vld [vmem:[%s500 + $0x378] sm:$0xff]
        %v697 = vld [vmem:[%s500 + $0x380] sm:$0xff]
        %v698 = vld [vmem:[%s500 + $0x388] sm:$0xff]
        %v699 = vld [vmem:[%s500 + $0x390] sm:$0xff]
        %v700 = vld [vmem:[%s500 + $0x398] sm:$0xff]
        %v701 = vld [vmem:[%s500 + $0x3a0] sm:$0xff]
        %v702 = vld [vmem:[%s500 + $0x3a8] sm:$0xff]
        %v703 = vld [vmem:[%s500 + $0x3b0] sm:$0xff]
        %v704 = vld [vmem:[%s500 + $0x3b8] sm:$0xff]
        %v705 = vld [vmem:[%s500 + $0x3c0] sm:$0xff]
        %v706 = vld [vmem:[%s500 + $0x3c8] sm:$0xff]
        %v707 = vld [vmem:[%s500 + $0x3d0] sm:$0xff]
        %v708 = vld [vmem:[%s500 + $0x3d8] sm:$0xff]
        %v709 = vld [vmem:[%s500 + $0x3e0] sm:$0xff]
        %v710 = vld [vmem:[%s500 + $0x3e8] sm:$0xff]
        %v711 = vld [vmem:[%s500 + $0x3f0] sm:$0xff]
        %v712 = vld [vmem:[%s500 + $0x3f8] sm:$0xff]
        %v713 = vld [vmem:[%s547] sm:$0xf]
        %v715 = vlaneseq
        %v716 = vshrl.u32 %v715, 7
        %v717 = vsub.s32 0, %v716
        %v718 = vrot.slane %v713, %v717
        %v719 = vlaneseq
        %v720 = vshrl.u32 %v719, 7
        %v721 = vsub.s32 1, %v720
        %v722 = vrot.slane %v713, %v721
        %v723 = vlaneseq
        %v724 = vshrl.u32 %v723, 7
        %v725 = vsub.s32 2, %v724
        %v726 = vrot.slane %v713, %v725
        %v727 = vlaneseq
        %v728 = vshrl.u32 %v727, 7
        %v729 = vsub.s32 3, %v728
        %v730 = vrot.slane %v713, %v729
        %v863 = vunpack.c.l.b16 %v585
        %v864 = vunpack.c.h.b16 %v585
        %v865 = vunpack.c.l.b16 %v586
        %v866 = vunpack.c.h.b16 %v586
        %v867 = vunpack.c.l.b16 %v587
        %v868 = vunpack.c.h.b16 %v587
        %v869 = vunpack.c.l.b16 %v588
        %v870 = vunpack.c.h.b16 %v588
        %v871 = vunpack.c.l.b16 %v589
        %v872 = vunpack.c.h.b16 %v589
        %v873 = vunpack.c.l.b16 %v590
        %v874 = vunpack.c.h.b16 %v590
        %v875 = vunpack.c.l.b16 %v591
        %v876 = vunpack.c.h.b16 %v591
        %v877 = vunpack.c.l.b16 %v592
        %v878 = vunpack.c.h.b16 %v592
        %v879 = vunpack.c.l.b16 %v593
        %v880 = vunpack.c.h.b16 %v593
        %v881 = vunpack.c.l.b16 %v594
        %v882 = vunpack.c.h.b16 %v594
        %v883 = vunpack.c.l.b16 %v595
        %v884 = vunpack.c.h.b16 %v595
        %v885 = vunpack.c.l.b16 %v596
        %v886 = vunpack.c.h.b16 %v596
        %v887 = vunpack.c.l.b16 %v597
        %v888 = vunpack.c.h.b16 %v597
        %v889 = vunpack.c.l.b16 %v598
        %v890 = vunpack.c.h.b16 %v598
        %v891 = vunpack.c.l.b16 %v599
        %v892 = vunpack.c.h.b16 %v599
        %v893 = vunpack.c.l.b16 %v600
        %v894 = vunpack.c.h.b16 %v600
        %v895 = vunpack.c.l.b16 %v601
        %v896 = vunpack.c.h.b16 %v601
        %v897 = vunpack.c.l.b16 %v602
        %v898 = vunpack.c.h.b16 %v602
        %v899 = vunpack.c.l.b16 %v603
        %v900 = vunpack.c.h.b16 %v603
        %v901 = vunpack.c.l.b16 %v604
        %v902 = vunpack.c.h.b16 %v604
        %v903 = vunpack.c.l.b16 %v605
        %v904 = vunpack.c.h.b16 %v605
        %v905 = vunpack.c.l.b16 %v606
        %v906 = vunpack.c.h.b16 %v606
        %v907 = vunpack.c.l.b16 %v607
        %v908 = vunpack.c.h.b16 %v607
        %v909 = vunpack.c.l.b16 %v608
        %v910 = vunpack.c.h.b16 %v608
        %v911 = vunpack.c.l.b16 %v609
        %v912 = vunpack.c.h.b16 %v609
        %v913 = vunpack.c.l.b16 %v610
        %v914 = vunpack.c.h.b16 %v610
        %v915 = vunpack.c.l.b16 %v611
        %v916 = vunpack.c.h.b16 %v611
        %v917 = vunpack.c.l.b16 %v612
        %v918 = vunpack.c.h.b16 %v612
        %v919 = vunpack.c.l.b16 %v613
        %v920 = vunpack.c.h.b16 %v613
        %v921 = vunpack.c.l.b16 %v614
        %v922 = vunpack.c.h.b16 %v614
        %v923 = vunpack.c.l.b16 %v615
        %v924 = vunpack.c.h.b16 %v615
        %v925 = vunpack.c.l.b16 %v616
        %v926 = vunpack.c.h.b16 %v616
        %v927 = vunpack.c.l.b16 %v617
        %v928 = vunpack.c.h.b16 %v617
        %v929 = vunpack.c.l.b16 %v618
        %v930 = vunpack.c.h.b16 %v618
        %v931 = vunpack.c.l.b16 %v619
        %v932 = vunpack.c.h.b16 %v619
        %v933 = vunpack.c.l.b16 %v620
        %v934 = vunpack.c.h.b16 %v620
        %v935 = vunpack.c.l.b16 %v621
        %v936 = vunpack.c.h.b16 %v621
        %v937 = vunpack.c.l.b16 %v622
        %v938 = vunpack.c.h.b16 %v622
        %v939 = vunpack.c.l.b16 %v623
        %v940 = vunpack.c.h.b16 %v623
        %v941 = vunpack.c.l.b16 %v624
        %v942 = vunpack.c.h.b16 %v624
        %v943 = vunpack.c.l.b16 %v625
        %v944 = vunpack.c.h.b16 %v625
        %v945 = vunpack.c.l.b16 %v626
        %v946 = vunpack.c.h.b16 %v626
        %v947 = vunpack.c.l.b16 %v627
        %v948 = vunpack.c.h.b16 %v627
        %v949 = vunpack.c.l.b16 %v628
        %v950 = vunpack.c.h.b16 %v628
        %v951 = vunpack.c.l.b16 %v629
        %v952 = vunpack.c.h.b16 %v629
        %v953 = vunpack.c.l.b16 %v630
        %v954 = vunpack.c.h.b16 %v630
        %v955 = vunpack.c.l.b16 %v631
        %v956 = vunpack.c.h.b16 %v631
        %v957 = vunpack.c.l.b16 %v632
        %v958 = vunpack.c.h.b16 %v632
        %v959 = vunpack.c.l.b16 %v633
        %v960 = vunpack.c.h.b16 %v633
        %v961 = vunpack.c.l.b16 %v634
        %v962 = vunpack.c.h.b16 %v634
        %v963 = vunpack.c.l.b16 %v635
        %v964 = vunpack.c.h.b16 %v635
        %v965 = vunpack.c.l.b16 %v636
        %v966 = vunpack.c.h.b16 %v636
        %v967 = vunpack.c.l.b16 %v637
        %v968 = vunpack.c.h.b16 %v637
        %v969 = vunpack.c.l.b16 %v638
        %v970 = vunpack.c.h.b16 %v638
        %v971 = vunpack.c.l.b16 %v639
        %v972 = vunpack.c.h.b16 %v639
        %v973 = vunpack.c.l.b16 %v640
        %v974 = vunpack.c.h.b16 %v640
        %v975 = vunpack.c.l.b16 %v641
        %v976 = vunpack.c.h.b16 %v641
        %v977 = vunpack.c.l.b16 %v642
        %v978 = vunpack.c.h.b16 %v642
        %v979 = vunpack.c.l.b16 %v643
        %v980 = vunpack.c.h.b16 %v643
        %v981 = vunpack.c.l.b16 %v644
        %v982 = vunpack.c.h.b16 %v644
        %v983 = vunpack.c.l.b16 %v645
        %v984 = vunpack.c.h.b16 %v645
        %v985 = vunpack.c.l.b16 %v646
        %v986 = vunpack.c.h.b16 %v646
        %v987 = vunpack.c.l.b16 %v647
        %v988 = vunpack.c.h.b16 %v647
        %v989 = vunpack.c.l.b16 %v648
        %v990 = vunpack.c.h.b16 %v648
        %v991 = vunpack.c.l.b16 %v649
        %v992 = vunpack.c.h.b16 %v649
        %v993 = vunpack.c.l.b16 %v650
        %v994 = vunpack.c.h.b16 %v650
        %v995 = vunpack.c.l.b16 %v651
        %v996 = vunpack.c.h.b16 %v651
        %v997 = vunpack.c.l.b16 %v652
        %v998 = vunpack.c.h.b16 %v652
        %v999 = vunpack.c.l.b16 %v653
        %v1000 = vunpack.c.h.b16 %v653
        %v1001 = vunpack.c.l.b16 %v654
        %v1002 = vunpack.c.h.b16 %v654
        %v1003 = vunpack.c.l.b16 %v655
        %v1004 = vunpack.c.h.b16 %v655
        %v1005 = vunpack.c.l.b16 %v656
        %v1006 = vunpack.c.h.b16 %v656
        %v1007 = vunpack.c.l.b16 %v657
        %v1008 = vunpack.c.h.b16 %v657
        %v1009 = vunpack.c.l.b16 %v658
        %v1010 = vunpack.c.h.b16 %v658
        %v1011 = vunpack.c.l.b16 %v659
        %v1012 = vunpack.c.h.b16 %v659
        %v1013 = vunpack.c.l.b16 %v660
        %v1014 = vunpack.c.h.b16 %v660
        %v1015 = vunpack.c.l.b16 %v661
        %v1016 = vunpack.c.h.b16 %v661
        %v1017 = vunpack.c.l.b16 %v662
        %v1018 = vunpack.c.h.b16 %v662
        %v1019 = vunpack.c.l.b16 %v663
        %v1020 = vunpack.c.h.b16 %v663
        %v1021 = vunpack.c.l.b16 %v664
        %v1022 = vunpack.c.h.b16 %v664
        %v1023 = vunpack.c.l.b16 %v665
        %v1024 = vunpack.c.h.b16 %v665
        %v1025 = vunpack.c.l.b16 %v666
        %v1026 = vunpack.c.h.b16 %v666
        %v1027 = vunpack.c.l.b16 %v667
        %v1028 = vunpack.c.h.b16 %v667
        %v1029 = vunpack.c.l.b16 %v668
        %v1030 = vunpack.c.h.b16 %v668
        %v1031 = vunpack.c.l.b16 %v669
        %v1032 = vunpack.c.h.b16 %v669
        %v1033 = vunpack.c.l.b16 %v670
        %v1034 = vunpack.c.h.b16 %v670
        %v1035 = vunpack.c.l.b16 %v671
        %v1036 = vunpack.c.h.b16 %v671
        %v1037 = vunpack.c.l.b16 %v672
        %v1038 = vunpack.c.h.b16 %v672
        %v1039 = vunpack.c.l.b16 %v673
        %v1040 = vunpack.c.h.b16 %v673
        %v1041 = vunpack.c.l.b16 %v674
        %v1042 = vunpack.c.h.b16 %v674
        %v1043 = vunpack.c.l.b16 %v675
        %v1044 = vunpack.c.h.b16 %v675
        %v1045 = vunpack.c.l.b16 %v676
        %v1046 = vunpack.c.h.b16 %v676
        %v1047 = vunpack.c.l.b16 %v677
        %v1048 = vunpack.c.h.b16 %v677
        %v1049 = vunpack.c.l.b16 %v678
        %v1050 = vunpack.c.h.b16 %v678
        %v1051 = vunpack.c.l.b16 %v679
        %v1052 = vunpack.c.h.b16 %v679
        %v1053 = vunpack.c.l.b16 %v680
        %v1054 = vunpack.c.h.b16 %v680
        %v1055 = vunpack.c.l.b16 %v681
        %v1056 = vunpack.c.h.b16 %v681
        %v1057 = vunpack.c.l.b16 %v682
        %v1058 = vunpack.c.h.b16 %v682
        %v1059 = vunpack.c.l.b16 %v683
        %v1060 = vunpack.c.h.b16 %v683
        %v1061 = vunpack.c.l.b16 %v684
        %v1062 = vunpack.c.h.b16 %v684
        %v1063 = vunpack.c.l.b16 %v685
        %v1064 = vunpack.c.h.b16 %v685
        %v1065 = vunpack.c.l.b16 %v686
        %v1066 = vunpack.c.h.b16 %v686
        %v1067 = vunpack.c.l.b16 %v687
        %v1068 = vunpack.c.h.b16 %v687
        %v1069 = vunpack.c.l.b16 %v688
        %v1070 = vunpack.c.h.b16 %v688
        %v1071 = vunpack.c.l.b16 %v689
        %v1072 = vunpack.c.h.b16 %v689
        %v1073 = vunpack.c.l.b16 %v690
        %v1074 = vunpack.c.h.b16 %v690
        %v1075 = vunpack.c.l.b16 %v691
        %v1076 = vunpack.c.h.b16 %v691
        %v1077 = vunpack.c.l.b16 %v692
        %v1078 = vunpack.c.h.b16 %v692
        %v1079 = vunpack.c.l.b16 %v693
        %v1080 = vunpack.c.h.b16 %v693
        %v1081 = vunpack.c.l.b16 %v694
        %v1082 = vunpack.c.h.b16 %v694
        %v1083 = vunpack.c.l.b16 %v695
        %v1084 = vunpack.c.h.b16 %v695
        %v1085 = vunpack.c.l.b16 %v696
        %v1086 = vunpack.c.h.b16 %v696
        %v1087 = vunpack.c.l.b16 %v697
        %v1088 = vunpack.c.h.b16 %v697
        %v1089 = vunpack.c.l.b16 %v698
        %v1090 = vunpack.c.h.b16 %v698
        %v1091 = vunpack.c.l.b16 %v699
        %v1092 = vunpack.c.h.b16 %v699
        %v1093 = vunpack.c.l.b16 %v700
        %v1094 = vunpack.c.h.b16 %v700
        %v1095 = vunpack.c.l.b16 %v701
        %v1096 = vunpack.c.h.b16 %v701
        %v1097 = vunpack.c.l.b16 %v702
        %v1098 = vunpack.c.h.b16 %v702
        %v1099 = vunpack.c.l.b16 %v703
        %v1100 = vunpack.c.h.b16 %v703
        %v1101 = vunpack.c.l.b16 %v704
        %v1102 = vunpack.c.h.b16 %v704
        %v1103 = vunpack.c.l.b16 %v705
        %v1104 = vunpack.c.h.b16 %v705
        %v1105 = vunpack.c.l.b16 %v706
        %v1106 = vunpack.c.h.b16 %v706
        %v1107 = vunpack.c.l.b16 %v707
        %v1108 = vunpack.c.h.b16 %v707
        %v1109 = vunpack.c.l.b16 %v708
        %v1110 = vunpack.c.h.b16 %v708
        %v1111 = vunpack.c.l.b16 %v709
        %v1112 = vunpack.c.h.b16 %v709
        %v1113 = vunpack.c.l.b16 %v710
        %v1114 = vunpack.c.h.b16 %v710
        %v1115 = vunpack.c.l.b16 %v711
        %v1116 = vunpack.c.h.b16 %v711
        %v1117 = vunpack.c.l.b16 %v712
        %v1118 = vunpack.c.h.b16 %v712
        %v1119 = vpack.c.b16 %v867, %v863
        %v1120 = vpack.c.b16 %v868, %v864
        %v1121 = vpack.c.b16 %v869, %v865
        %v1122 = vpack.c.b16 %v870, %v866
        %v1123 = vpack.c.b16 %v875, %v871
        %v1124 = vpack.c.b16 %v876, %v872
        %v1125 = vpack.c.b16 %v877, %v873
        %v1126 = vpack.c.b16 %v878, %v874
        %v1127 = vpack.c.b16 %v883, %v879
        %v1128 = vpack.c.b16 %v884, %v880
        %v1129 = vpack.c.b16 %v885, %v881
        %v1130 = vpack.c.b16 %v886, %v882
        %v1131 = vpack.c.b16 %v891, %v887
        %v1132 = vpack.c.b16 %v892, %v888
        %v1133 = vpack.c.b16 %v893, %v889
        %v1134 = vpack.c.b16 %v894, %v890
        %v1135 = vpack.c.b16 %v899, %v895
        %v1136 = vpack.c.b16 %v900, %v896
        %v1137 = vpack.c.b16 %v901, %v897
        %v1138 = vpack.c.b16 %v902, %v898
        %v1139 = vpack.c.b16 %v907, %v903
        %v1140 = vpack.c.b16 %v908, %v904
        %v1141 = vpack.c.b16 %v909, %v905
        %v1142 = vpack.c.b16 %v910, %v906
        %v1143 = vpack.c.b16 %v915, %v911
        %v1144 = vpack.c.b16 %v916, %v912
        %v1145 = vpack.c.b16 %v917, %v913
        %v1146 = vpack.c.b16 %v918, %v914
        %v1147 = vpack.c.b16 %v923, %v919
        %v1148 = vpack.c.b16 %v924, %v920
        %v1149 = vpack.c.b16 %v925, %v921
        %v1150 = vpack.c.b16 %v926, %v922
        %v1151 = vpack.c.b16 %v931, %v927
        %v1152 = vpack.c.b16 %v932, %v928
        %v1153 = vpack.c.b16 %v933, %v929
        %v1154 = vpack.c.b16 %v934, %v930
        %v1155 = vpack.c.b16 %v939, %v935
        %v1156 = vpack.c.b16 %v940, %v936
        %v1157 = vpack.c.b16 %v941, %v937
        %v1158 = vpack.c.b16 %v942, %v938
        %v1159 = vpack.c.b16 %v947, %v943
        %v1160 = vpack.c.b16 %v948, %v944
        %v1161 = vpack.c.b16 %v949, %v945
        %v1162 = vpack.c.b16 %v950, %v946
        %v1163 = vpack.c.b16 %v955, %v951
        %v1164 = vpack.c.b16 %v956, %v952
        %v1165 = vpack.c.b16 %v957, %v953
        %v1166 = vpack.c.b16 %v958, %v954
        %v1167 = vpack.c.b16 %v963, %v959
        %v1168 = vpack.c.b16 %v964, %v960
        %v1169 = vpack.c.b16 %v965, %v961
        %v1170 = vpack.c.b16 %v966, %v962
        %v1171 = vpack.c.b16 %v971, %v967
        %v1172 = vpack.c.b16 %v972, %v968
        %v1173 = vpack.c.b16 %v973, %v969
        %v1174 = vpack.c.b16 %v974, %v970
        %v1175 = vpack.c.b16 %v979, %v975
        %v1176 = vpack.c.b16 %v980, %v976
        %v1177 = vpack.c.b16 %v981, %v977
        %v1178 = vpack.c.b16 %v982, %v978
        %v1179 = vpack.c.b16 %v987, %v983
        %v1180 = vpack.c.b16 %v988, %v984
        %v1181 = vpack.c.b16 %v989, %v985
        %v1182 = vpack.c.b16 %v990, %v986
        %v1183 = vpack.c.b16 %v995, %v991
        %v1184 = vpack.c.b16 %v996, %v992
        %v1185 = vpack.c.b16 %v997, %v993
        %v1186 = vpack.c.b16 %v998, %v994
        %v1187 = vpack.c.b16 %v1003, %v999
        %v1188 = vpack.c.b16 %v1004, %v1000
        %v1189 = vpack.c.b16 %v1005, %v1001
        %v1190 = vpack.c.b16 %v1006, %v1002
        %v1191 = vpack.c.b16 %v1011, %v1007
        %v1192 = vpack.c.b16 %v1012, %v1008
        %v1193 = vpack.c.b16 %v1013, %v1009
        %v1194 = vpack.c.b16 %v1014, %v1010
        %v1195 = vpack.c.b16 %v1019, %v1015
        %v1196 = vpack.c.b16 %v1020, %v1016
        %v1197 = vpack.c.b16 %v1021, %v1017
        %v1198 = vpack.c.b16 %v1022, %v1018
        %v1199 = vpack.c.b16 %v1027, %v1023
        %v1200 = vpack.c.b16 %v1028, %v1024
        %v1201 = vpack.c.b16 %v1029, %v1025
        %v1202 = vpack.c.b16 %v1030, %v1026
        %v1203 = vpack.c.b16 %v1035, %v1031
        %v1204 = vpack.c.b16 %v1036, %v1032
        %v1205 = vpack.c.b16 %v1037, %v1033
        %v1206 = vpack.c.b16 %v1038, %v1034
        %v1207 = vpack.c.b16 %v1043, %v1039
        %v1208 = vpack.c.b16 %v1044, %v1040
        %v1209 = vpack.c.b16 %v1045, %v1041
        %v1210 = vpack.c.b16 %v1046, %v1042
        %v1211 = vpack.c.b16 %v1051, %v1047
        %v1212 = vpack.c.b16 %v1052, %v1048
        %v1213 = vpack.c.b16 %v1053, %v1049
        %v1214 = vpack.c.b16 %v1054, %v1050
        %v1215 = vpack.c.b16 %v1059, %v1055
        %v1216 = vpack.c.b16 %v1060, %v1056
        %v1217 = vpack.c.b16 %v1061, %v1057
        %v1218 = vpack.c.b16 %v1062, %v1058
        %v1219 = vpack.c.b16 %v1067, %v1063
        %v1220 = vpack.c.b16 %v1068, %v1064
        %v1221 = vpack.c.b16 %v1069, %v1065
        %v1222 = vpack.c.b16 %v1070, %v1066
        %v1223 = vpack.c.b16 %v1075, %v1071
        %v1224 = vpack.c.b16 %v1076, %v1072
        %v1225 = vpack.c.b16 %v1077, %v1073
        %v1226 = vpack.c.b16 %v1078, %v1074
        %v1227 = vpack.c.b16 %v1083, %v1079
        %v1228 = vpack.c.b16 %v1084, %v1080
        %v1229 = vpack.c.b16 %v1085, %v1081
        %v1230 = vpack.c.b16 %v1086, %v1082
        %v1231 = vpack.c.b16 %v1091, %v1087
        %v1232 = vpack.c.b16 %v1092, %v1088
        %v1233 = vpack.c.b16 %v1093, %v1089
        %v1234 = vpack.c.b16 %v1094, %v1090
        %v1235 = vpack.c.b16 %v1099, %v1095
        %v1236 = vpack.c.b16 %v1100, %v1096
        %v1237 = vpack.c.b16 %v1101, %v1097
        %v1238 = vpack.c.b16 %v1102, %v1098
        %v1239 = vpack.c.b16 %v1107, %v1103
        %v1240 = vpack.c.b16 %v1108, %v1104
        %v1241 = vpack.c.b16 %v1109, %v1105
        %v1242 = vpack.c.b16 %v1110, %v1106
        %v1243 = vpack.c.b16 %v1115, %v1111
        %v1244 = vpack.c.b16 %v1116, %v1112
        %v1245 = vpack.c.b16 %v1117, %v1113
        %v1246 = vpack.c.b16 %v1118, %v1114
        %1375 = vmatprep.subr.bf16.mxu0 %v1120
        %1376 = vmatpush1.bf16.msra.mxu0 %v1119
        %1377 = vmatprep.subr.bf16.mxu0 %v1124
        %1378 = vmatpush1.bf16.msra.mxu0 %v1123
        %1379 = vmatprep.subr.bf16.mxu0 %v1128
        %1380 = vmatpush1.bf16.msra.mxu0 %v1127
        %1381 = vmatprep.subr.bf16.mxu0 %v1132
        %1382 = vmatpush1.bf16.msra.mxu0 %v1131
        %1383 = vmatprep.subr.bf16.mxu0 %v1136
        %1384 = vmatpush1.bf16.msra.mxu0 %v1135
        %1385 = vmatprep.subr.bf16.mxu0 %v1140
        %1386 = vmatpush1.bf16.msra.mxu0 %v1139
        %1387 = vmatprep.subr.bf16.mxu0 %v1144
        %1388 = vmatpush1.bf16.msra.mxu0 %v1143
        %1389 = vmatprep.subr.bf16.mxu0 %v1148
        %1390 = vmatpush1.bf16.msra.mxu0 %v1147
        %1391 = vmatprep.subr.bf16.mxu0 %v1152
        %1392 = vmatpush1.bf16.msra.mxu0 %v1151
        %1393 = vmatprep.subr.bf16.mxu0 %v1156
        %1394 = vmatpush1.bf16.msra.mxu0 %v1155
        %1395 = vmatprep.subr.bf16.mxu0 %v1160
        %1396 = vmatpush1.bf16.msra.mxu0 %v1159
        %1397 = vmatprep.subr.bf16.mxu0 %v1164
        %1398 = vmatpush1.bf16.msra.mxu0 %v1163
        %1399 = vmatprep.subr.bf16.mxu0 %v1168
        %1400 = vmatpush1.bf16.msra.mxu0 %v1167
        %1401 = vmatprep.subr.bf16.mxu0 %v1172
        %1402 = vmatpush1.bf16.msra.mxu0 %v1171
        %1403 = vmatprep.subr.bf16.mxu0 %v1176
        %1404 = vmatpush1.bf16.msra.mxu0 %v1175
        %1405 = vmatprep.subr.bf16.mxu0 %v1180
        %1406 = vmatpush1.bf16.msra.mxu0 %v1179
        %1407 = vmatprep.mubr.bf16.mxu0 %v582
        %1408 = vmatmul.mubr.bf16.gmra.mrb[0].mxu0 %v581
        %v1409 = vpop.f32.mrb[0].mxu0
        %v1410 = vadd.f32 %v718, %v1409
        %v1411 = vpop.f32.mrb[0].mxu0
        %v1412 = vadd.f32 %v722, %v1411
        %v1413 = vpop.f32.mrb[0].mxu0
        %v1414 = vpop.f32.mrb[0].mxu0
        %1415 = vdwg.mxu0
        %1416 = vmatprep.subr.bf16.mxu0 %v1184
        %1417 = vmatpush1.bf16.msra.mxu0 %v1183
        %1418 = vmatprep.subr.bf16.mxu0 %v1188
        %1419 = vmatpush1.bf16.msra.mxu0 %v1187
        %1420 = vmatprep.subr.bf16.mxu0 %v1192
        %1421 = vmatpush1.bf16.msra.mxu0 %v1191
        %1422 = vmatprep.subr.bf16.mxu0 %v1196
        %1423 = vmatpush1.bf16.msra.mxu0 %v1195
        %1424 = vmatprep.subr.bf16.mxu0 %v1200
        %1425 = vmatpush1.bf16.msra.mxu0 %v1199
        %1426 = vmatprep.subr.bf16.mxu0 %v1204
        %1427 = vmatpush1.bf16.msra.mxu0 %v1203
        %1428 = vmatprep.subr.bf16.mxu0 %v1208
        %1429 = vmatpush1.bf16.msra.mxu0 %v1207
        %1430 = vmatprep.subr.bf16.mxu0 %v1212
        %1431 = vmatpush1.bf16.msra.mxu0 %v1211
        %1432 = vmatprep.subr.bf16.mxu0 %v1216
        %1433 = vmatpush1.bf16.msra.mxu0 %v1215
        %1434 = vmatprep.subr.bf16.mxu0 %v1220
        %1435 = vmatpush1.bf16.msra.mxu0 %v1219
        %1436 = vmatprep.subr.bf16.mxu0 %v1224
        %1437 = vmatpush1.bf16.msra.mxu0 %v1223
        %1438 = vmatprep.subr.bf16.mxu0 %v1228
        %1439 = vmatpush1.bf16.msra.mxu0 %v1227
        %1440 = vmatprep.subr.bf16.mxu0 %v1232
        %1441 = vmatpush1.bf16.msra.mxu0 %v1231
        %1442 = vmatprep.subr.bf16.mxu0 %v1236
        %1443 = vmatpush1.bf16.msra.mxu0 %v1235
        %1444 = vmatprep.subr.bf16.mxu0 %v1240
        %1445 = vmatpush1.bf16.msra.mxu0 %v1239
        %1446 = vmatprep.subr.bf16.mxu0 %v1244
        %1447 = vmatpush1.bf16.msra.mxu0 %v1243
        %1448 = vmatprep.mubr.bf16.mxu0 %v584
        %1449 = vmatmul.mubr.bf16.gmra.mrb[0].mxu0 %v583
        %v1450 = vpop.f32.mrb[0].mxu0
        %v1451 = vadd.f32 %v1410, %v1450
        %v1452 = vpop.f32.mrb[0].mxu0
        %v1453 = vadd.f32 %v1412, %v1452
        %v1454 = vpop.f32.mrb[0].mxu0
        %v1455 = vpop.f32.mrb[0].mxu0
        %1456 = vdwg.mxu0
        %1457 = vmatprep.subr.bf16.mxu0 %v1122
        %1458 = vmatpush1.bf16.msra.mxu0 %v1121
        %1459 = vmatprep.subr.bf16.mxu0 %v1126
        %1460 = vmatpush1.bf16.msra.mxu0 %v1125
        %1461 = vmatprep.subr.bf16.mxu0 %v1130
        %1462 = vmatpush1.bf16.msra.mxu0 %v1129
        %1463 = vmatprep.subr.bf16.mxu0 %v1134
        %1464 = vmatpush1.bf16.msra.mxu0 %v1133
        %1465 = vmatprep.subr.bf16.mxu0 %v1138
        %1466 = vmatpush1.bf16.msra.mxu0 %v1137
        %1467 = vmatprep.subr.bf16.mxu0 %v1142
        %1468 = vmatpush1.bf16.msra.mxu0 %v1141
        %1469 = vmatprep.subr.bf16.mxu0 %v1146
        %1470 = vmatpush1.bf16.msra.mxu0 %v1145
        %1471 = vmatprep.subr.bf16.mxu0 %v1150
        %1472 = vmatpush1.bf16.msra.mxu0 %v1149
        %1473 = vmatprep.subr.bf16.mxu0 %v1154
        %1474 = vmatpush1.bf16.msra.mxu0 %v1153
        %1475 = vmatprep.subr.bf16.mxu0 %v1158
        %1476 = vmatpush1.bf16.msra.mxu0 %v1157
        %1477 = vmatprep.subr.bf16.mxu0 %v1162
        %1478 = vmatpush1.bf16.msra.mxu0 %v1161
        %1479 = vmatprep.subr.bf16.mxu0 %v1166
        %1480 = vmatpush1.bf16.msra.mxu0 %v1165
        %1481 = vmatprep.subr.bf16.mxu0 %v1170
        %1482 = vmatpush1.bf16.msra.mxu0 %v1169
        %1483 = vmatprep.subr.bf16.mxu0 %v1174
        %1484 = vmatpush1.bf16.msra.mxu0 %v1173
        %1485 = vmatprep.subr.bf16.mxu0 %v1178
        %1486 = vmatpush1.bf16.msra.mxu0 %v1177
        %1487 = vmatprep.subr.bf16.mxu0 %v1182
        %1488 = vmatpush1.bf16.msra.mxu0 %v1181
        %1489 = vmatprep.mubr.bf16.mxu0 %v582
        %1490 = vmatmul.mubr.bf16.gmra.mrb[0].mxu0 %v581
        %v1491 = vpop.f32.mrb[0].mxu0
        %v1492 = vadd.f32 %v726, %v1491
        %v1493 = vpop.f32.mrb[0].mxu0
        %v1494 = vadd.f32 %v730, %v1493
        %v1495 = vpop.f32.mrb[0].mxu0
        %v1496 = vpop.f32.mrb[0].mxu0
        %1497 = vdwg.mxu0
        %1498 = vmatprep.subr.bf16.mxu0 %v1186
        %1499 = vmatpush1.bf16.msra.mxu0 %v1185
        %1500 = vmatprep.subr.bf16.mxu0 %v1190
        %1501 = vmatpush1.bf16.msra.mxu0 %v1189
        %1502 = vmatprep.subr.bf16.mxu0 %v1194
        %1503 = vmatpush1.bf16.msra.mxu0 %v1193
        %1504 = vmatprep.subr.bf16.mxu0 %v1198
        %1505 = vmatpush1.bf16.msra.mxu0 %v1197
        %1506 = vmatprep.subr.bf16.mxu0 %v1202
        %1507 = vmatpush1.bf16.msra.mxu0 %v1201
        %1508 = vmatprep.subr.bf16.mxu0 %v1206
        %1509 = vmatpush1.bf16.msra.mxu0 %v1205
        %1510 = vmatprep.subr.bf16.mxu0 %v1210
        %1511 = vmatpush1.bf16.msra.mxu0 %v1209
        %1512 = vmatprep.subr.bf16.mxu0 %v1214
        %1513 = vmatpush1.bf16.msra.mxu0 %v1213
        %1514 = vmatprep.subr.bf16.mxu0 %v1218
        %1515 = vmatpush1.bf16.msra.mxu0 %v1217
        %1516 = vmatprep.subr.bf16.mxu0 %v1222
        %1517 = vmatpush1.bf16.msra.mxu0 %v1221
        %1518 = vmatprep.subr.bf16.mxu0 %v1226
        %1519 = vmatpush1.bf16.msra.mxu0 %v1225
        %1520 = vmatprep.subr.bf16.mxu0 %v1230
        %1521 = vmatpush1.bf16.msra.mxu0 %v1229
        %1522 = vmatprep.subr.bf16.mxu0 %v1234
        %1523 = vmatpush1.bf16.msra.mxu0 %v1233
        %1524 = vmatprep.subr.bf16.mxu0 %v1238
        %1525 = vmatpush1.bf16.msra.mxu0 %v1237
        %1526 = vmatprep.subr.bf16.mxu0 %v1242
        %1527 = vmatpush1.bf16.msra.mxu0 %v1241
        %1528 = vmatprep.subr.bf16.mxu0 %v1246
        %1529 = vmatpush1.bf16.msra.mxu0 %v1245
        %1530 = vmatprep.mubr.bf16.mxu0 %v584
        %1531 = vmatmul.mubr.bf16.gmra.mrb[0].mxu0 %v583
        %v1532 = vpop.f32.mrb[0].mxu0
        %v1533 = vadd.f32 %v1492, %v1532
        %v1534 = vpop.f32.mrb[0].mxu0
        %v1535 = vadd.f32 %v1494, %v1534
        %v1536 = vpop.f32.mrb[0].mxu0
        %v1537 = vpop.f32.mrb[0].mxu0
        %1538 = vdwg.mxu0
        %v1539 = vld [vmem:[%s542] sm:$0xff]
        %v1544 = vcombine.low %v1451, %v1453
        %v1545 = vcombine.low %v1533, %v1535
        %v1547 = vunpack.c.l.s4 1983009808
        %v1548 = vunpack.c.0.s8 %v1547
        %v1549 = vlaneseq
        %v1550 = vshrl.u32 %v1549, 7
        %v1551 = vsub.s32 %v1548, %v1550
        %v1552 = vrot.slane %v1544, %v1551
        %v1554 = vunpack.c.l.s4 1983009808
        %v1555 = vunpack.c.0.s8 %v1554
        %v1556 = vlaneseq
        %v1557 = vshrl.u32 %v1556, 7
        %v1558 = vsub.s32 %v1555, %v1557
        %v1559 = vrot.slane %v1545, %v1558
        %v1560 = vcombine.low %v1552, %v1559
        %v1562 = vsub.f32 %v1539, %v1560
        %v1563 = vld [vmem:[%s552] sm:$0xf]
        %v1564 = vsub.f32 -0.9189385, %v1563
        %v1565 = vsub.f32 0.0, %v1563
        %v1566 = vmul.f32 %v1565, 1.442695
        %v1567 = vpow.pop %v1566
        %v1569 = vlaneseq
        %v1570 = vshrl.u32 %v1569, 7
        %v1571 = vsub.s32 0, %v1570
        %v1572 = vrot.slane %v1567, %v1571
        %v1573 = vlaneseq
        %v1574 = vshrl.u32 %v1573, 7
        %v1575 = vsub.s32 1, %v1574
        %v1576 = vrot.slane %v1567, %v1575
        %v1577 = vlaneseq
        %v1578 = vshrl.u32 %v1577, 7
        %v1579 = vsub.s32 2, %v1578
        %v1580 = vrot.slane %v1567, %v1579
        %v1581 = vlaneseq
        %v1582 = vshrl.u32 %v1581, 7
        %v1583 = vsub.s32 3, %v1582
        %v1584 = vrot.slane %v1567, %v1583
        %v1585 = vcombine.low %v1572, %v1576
        %v1586 = vcombine.low %v1580, %v1584
        %v1588 = vunpack.c.l.s4 1983009808
        %v1589 = vunpack.c.0.s8 %v1588
        %v1590 = vlaneseq
        %v1591 = vshrl.u32 %v1590, 7
        %v1592 = vsub.s32 %v1589, %v1591
        %v1593 = vrot.slane %v1585, %v1592
        %v1595 = vunpack.c.l.s4 1983009808
        %v1596 = vunpack.c.0.s8 %v1595
        %v1597 = vlaneseq
        %v1598 = vshrl.u32 %v1597, 7
        %v1599 = vsub.s32 %v1596, %v1598
        %v1600 = vrot.slane %v1586, %v1599
        %v1601 = vcombine.low %v1593, %v1600
        %v1603 = vmul.f32 %v1562, %v1601
        %v1604 = vmul.f32 %v1603, %v1603
        %v1605 = vmul.f32 %v1604, 0.5
        %v1607 = vlaneseq
        %v1608 = vshrl.u32 %v1607, 7
        %v1609 = vsub.s32 0, %v1608
        %v1610 = vrot.slane %v1564, %v1609
        %v1611 = vlaneseq
        %v1612 = vshrl.u32 %v1611, 7
        %v1613 = vsub.s32 1, %v1612
        %v1614 = vrot.slane %v1564, %v1613
        %v1615 = vlaneseq
        %v1616 = vshrl.u32 %v1615, 7
        %v1617 = vsub.s32 2, %v1616
        %v1618 = vrot.slane %v1564, %v1617
        %v1619 = vlaneseq
        %v1620 = vshrl.u32 %v1619, 7
        %v1621 = vsub.s32 3, %v1620
        %v1622 = vrot.slane %v1564, %v1621
        %v1628 = vcombine.high %v1605, %v1605
        %v1630 = vunpack.c.l.s4 1983009808
        %v1631 = vunpack.c.0.s8 %v1630
        %v1632 = vlaneseq
        %v1633 = vshrl.u32 %v1632, 7
        %v1634 = vsub.s32 %v1631, %v1633
        %v1635 = vrot.slane %v1605, %v1634
        %v1637 = vunpack.c.l.s4 1983009808
        %v1638 = vunpack.c.0.s8 %v1637
        %v1639 = vlaneseq
        %v1640 = vshrl.u32 %v1639, 7
        %v1641 = vsub.s32 %v1638, %v1640
        %v1642 = vrot.slane %v1628, %v1641
        %v1643 = vcombine.high %v1635, %v1635
        %v1644 = vcombine.high %v1642, %v1642
        %v1649 = vsub.f32 %v1610, %v1635
        %v1650 = vsub.f32 %v1614, %v1643
        %v1651 = vsub.f32 %v1618, %v1642
        %v1652 = vsub.f32 %v1622, %v1644
        %vm1653 = vcmask 1041408
        %v1654 = vsel %vm1653, %v1649, 0.0
        %v1655 = vsel %vm1653, %v1650, 0.0
        %v1656 = vadd.f32 %v1654, %v1655
        %v1657 = vsel %vm1653, %v1651, 0.0
        %v1658 = vadd.f32 %v1656, %v1657
        %v1659 = vsel %vm1653, %v1652, 0.0
        %v1660 = vadd.f32 %v1658, %v1659
        %1661 = vadd.xlane.f32.xlu0 %v1660
        %v1662 = vpop.xlane.xlu0 %1661
        %vm1663 = vcmask 1024
        %1664 = vst.msk [vmem:[%s557] sm:$0x3] %vm1663, %v1662
        %p1665 = scmp.lt.s32.totalorder %s16, 1
        %s1666 = scalar_select %p1665, %s16, 1
        %s1667 = smul.addr %s1666, 2
        %s1668 = scalar_lea.vmem %s5, %s1667
        // Predicated region
        $region64: #{causal_multiscale_flow_forward.3} parent=58 // pred_check
          %p1669 = pneg %p159
        $region65: #{causal_multiscale_flow_forward.3} parent=58 // pred_check_branch
          %1671 = sbr.rel (%p1669) target = $region67
        $region66: #{causal_multiscale_flow_forward.3} parent=58 // pred_region
          _
        $region67: #{causal_multiscale_flow_forward.3} parent=58 // pred_fallthru
          _
      $region59: #{causal_multiscale_flow_forward.3} parent=5 // pred_fallthru
        _
      %p1672 = scmp.le.s32.totalorder 2, %s11
      // Predicated region
      $region68: #{causal_multiscale_flow_forward.3} parent=5 // pred_check
        %p1673 = pneg %p1672
      $region69: #{causal_multiscale_flow_forward.3} parent=5 // pred_check_branch
        %1675 = sbr.rel (%p1673) target = $region71
      $region70: #{causal_multiscale_flow_forward.3} parent=5 // pred_region
        %s1676 = ssub.s32 %s11, 2
        // Predicated region
        $region72: #{causal_multiscale_flow_forward.3} parent=70 // pred_check
          %p1677 = pneg %p165
        $region73: #{causal_multiscale_flow_forward.3} parent=70 // pred_check_branch
          %1679 = sbr.rel (%p1677) target = $region75
        $region74: #{causal_multiscale_flow_forward.3} parent=70 // pred_region
          %p1680 = scmp.lt.s32.totalorder %s17, 1
          %s1681 = scalar_select %p1680, %s17, 1
          %s1682 = smul.addr %s1681, 2
          %s1683 = scalar_lea.vmem %s5, %s1682
        $region75: #{causal_multiscale_flow_forward.3} parent=70 // pred_fallthru
          _
      $region71: #{causal_multiscale_flow_forward.3} parent=5 // pred_fallthru
        _
    $region6: #{causal_multiscale_flow_forward.3} parent=1 // loop_footer
      %s15 = sadd.s32 1, %s11
    $region7: #{causal_multiscale_flow_forward.3} parent=1 // loop_footer_branch
      %10 = sbr.rel target = $region3
    $region8: #{causal_multiscale_flow_forward.3} parent=1 // loop_exit
      _

</llo_original>
